<compile_context>
chip_gen: v7x
topology: tpu7x:2x2x1
jax: 0.10.0
libtpu: 0.0.40
codegen_flags: <defaults>
</compile_context>

<pallas_src>
import math
from functools import partial

import jax
import jax.numpy as jnp
from jax import lax
from jax.experimental import pallas as pl
from jax.experimental.pallas import tpu as pltpu


def _mha_kernel(x_ref, wq_ref, wk_ref, wv_ref, bq_ref, bk_ref, bv_ref,
                wp_ref, bp_ref, o_ref, *, n_heads: int):
    """One grid step == one batch element: QKV proj -> causal attention -> out proj."""
    L, D = x_ref.shape
    hd = D // n_heads
    x_dtype = x_ref.dtype

    x = x_ref[...]                                                   # (L, D)

    # --- Q/K/V projections: three MXU matmuls, outputs already lane-separate ---
    qf = jnp.dot(x, wq_ref[...], preferred_element_type=jnp.float32) + bq_ref[...]
    kf = jnp.dot(x, wk_ref[...], preferred_element_type=jnp.float32) + bk_ref[...]
    vf = jnp.dot(x, wv_ref[...], preferred_element_type=jnp.float32) + bv_ref[...]

    # Fold 1/sqrt(head_dim) into Q once; MXU operands in model dtype.
    q = (qf * (1.0 / math.sqrt(hd))).astype(x_dtype)
    k = kf.astype(x_dtype)
    v = vf.astype(x_dtype)

    # Additive causal bias (finite -> no NaN hazard in f32), built once.
    row = lax.broadcasted_iota(jnp.int32, (L, L), 0)
    col = lax.broadcasted_iota(jnp.int32, (L, L), 1)
    bias = jnp.where(col <= row, 0.0, -1e30).astype(jnp.float32)     # (L, L)

    # --- per-head attention; head outputs never touch VMEM, the output
    #     projection is accumulated head-by-head (== concat + single matmul) ---
    out_acc = None
    for h in range(n_heads):                                         # H=4: small unroll
        c0 = h * hd
        qh = q[:, c0:c0 + hd]                                        # (L, hd)
        kh = k[:, c0:c0 + hd]
        vh = v[:, c0:c0 + hd]

        # scores = (q / sqrt(hd)) @ k.T + causal bias   (f32 accumulate)
        s = lax.dot_general(qh, kh, (((1,), (1,)), ((), ())),
                            preferred_element_type=jnp.float32) + bias

        # f32 softmax with EXACT normalization (matches the reference).
        m = jnp.max(s, axis=-1, keepdims=True)
        e = jnp.exp(s - m)
        p = (e / jnp.sum(e, axis=-1, keepdims=True)).astype(x_dtype)

        o_h = jnp.dot(p, vh, preferred_element_type=jnp.float32).astype(x_dtype)

        # This head's slice of the output projection (sublane-aligned row slice).
        contrib = jnp.dot(o_h, wp_ref[c0:c0 + hd, :],
                          preferred_element_type=jnp.float32)        # (L, D)
        out_acc = contrib if out_acc is None else out_acc + contrib

    out = out_acc + bp_ref[...]
    o_ref[...] = out.astype(o_ref.dtype)                             # one lane-dense store


def multi_head_attention(x, w_qkv, b_qkv, w_proj, b_proj, *, n_heads: int):
    """x: (B, L, D); w_qkv: (D, 3D); b_qkv: (1, 3D); w_proj: (D, D); b_proj: (1, D).

    Weights are (in_features, out_features): the kernel computes x @ W + b,
    matching nn.Linear's x @ W_torch.T + b semantics.
    """
    B, L, D = x.shape
    dt = x.dtype

    # Lane-aligned Q/K/V operands (host-side split is free).
    w_q = w_qkv[:, 0:D].astype(dt)
    w_k = w_qkv[:, D:2 * D].astype(dt)
    w_v = w_qkv[:, 2 * D:3 * D].astype(dt)
    b_q = b_qkv[:, 0:D].astype(dt)
    b_k = b_qkv[:, D:2 * D].astype(dt)
    b_v = b_qkv[:, 2 * D:3 * D].astype(dt)
    w_p = w_proj.astype(dt)
    b_p = b_proj.astype(dt)

    def const2d(shape):
        # Constant block index => stays VMEM-resident across grid steps.
        return pl.BlockSpec(shape, lambda b: (0, 0))

    out = pl.pallas_call(
        partial(_mha_kernel, n_heads=n_heads),
        out_shape=jax.ShapeDtypeStruct((B, L, D), dt),
        grid=(B,),
        in_specs=[
            pl.BlockSpec((None, L, D), lambda b: (b, 0, 0)),         # x: one batch / step
            const2d((D, D)), const2d((D, D)), const2d((D, D)),       # Wq, Wk, Wv
            const2d((1, D)), const2d((1, D)), const2d((1, D)),       # bq, bk, bv
            const2d((D, D)), const2d((1, D)),                        # Wproj, bproj
        ],
        out_specs=pl.BlockSpec((None, L, D), lambda b: (b, 0, 0)),
        compiler_params=pltpu.CompilerParams(
            dimension_semantics=("parallel",),        # both TensorCores on v7x
            vmem_limit_bytes=48 * 1024 * 1024,        # raise per-generation at prod shapes
        ),
    )(x, w_q, w_k, w_v, b_q, b_k, b_v, w_p, b_p)
    return out


def _reference(x, w_qkv, b_qkv, w_proj, b_proj, n_heads):
    """Plain-JAX reference mirroring the PyTorch forward (HIGHEST-precision matmuls)."""
    B, L, D = x.shape
    hd = D // n_heads
    hi = jax.lax.Precision.HIGHEST
    qkv = jnp.dot(x, w_qkv, precision=hi) + b_qkv[0]
    q, k, v = jnp.split(qkv, 3, axis=-1)
    q = q.reshape(B, L, n_heads, hd).transpose(0, 2, 1, 3)
    k = k.reshape(B, L, n_heads, hd).transpose(0, 2, 1, 3)
    v = v.reshape(B, L, n_heads, hd).transpose(0, 2, 1, 3)
    scores = jnp.einsum("bhqd,bhkd->bhqk", q, k, precision=hi) / math.sqrt(hd)
    mask = jnp.tril(jnp.ones((L, L)))[None, None]
    scores = jnp.where(mask == 0, -jnp.inf, scores).astype(jnp.float32)
    probs = jax.nn.softmax(scores, axis=-1).astype(x.dtype)
    o = jnp.einsum("bhqk,bhkd->bhqd", probs, v, precision=hi)
    o = o.transpose(0, 2, 1, 3).reshape(B, L, D)
    return jnp.dot(o, w_proj, precision=hi) + b_proj[0]


if __name__ == "__main__":
    # Module config: max_seq_len=8, n_heads=4, n_embed=32
    B, L, D, H = 2, 8, 32, 4
    key = jax.random.PRNGKey(0)
    kx, k1, k2, k3, k4 = jax.random.split(key, 5)

    x = jax.random.normal(kx, (B, L, D), dtype=jnp.float32)
    # Deterministic Linear-like parameter init, (in, out) layout.
    w_qkv = jax.random.normal(k1, (D, 3 * D), dtype=jnp.float32) / math.sqrt(D)
    b_qkv = jax.random.normal(k2, (1, 3 * D), dtype=jnp.float32) * 0.01
    w_proj = jax.random.normal(k3, (D, D), dtype=jnp.float32) / math.sqrt(D)
    b_proj = jax.random.normal(k4, (1, D), dtype=jnp.float32) * 0.01

    out = multi_head_attention(x, w_qkv, b_qkv, w_proj, b_proj, n_heads=H)
    out = jax.block_until_ready(out)

    ref = _reference(x, w_qkv, b_qkv, w_proj, b_proj, H)
    assert out.shape == (B, L, D)
    # Tolerance covers MXU multi-pass f32 rounding vs. the HIGHEST-precision XLA
    # reference; any logic error (mask / head mixing / transpose) would be O(1).
    err = float(jnp.max(jnp.abs(out - ref)))
    assert err < 1e-2, f"mismatch vs reference: max abs err = {err}"

    print("KERNEL_OK")
</pallas_src>

<mosaic_0001>
module attributes {stable_mosaic.version = 11 : i64} {
  func.func @_mha_kernel(%arg0: i32, %arg1: memref<1x8x32xf32, #tpu.memory_space<vmem>>, %arg2: memref<32x32xf32, #tpu.memory_space<vmem>>, %arg3: memref<32x32xf32, #tpu.memory_space<vmem>>, %arg4: memref<32x32xf32, #tpu.memory_space<vmem>>, %arg5: memref<1x32xf32, #tpu.memory_space<vmem>>, %arg6: memref<1x32xf32, #tpu.memory_space<vmem>>, %arg7: memref<1x32xf32, #tpu.memory_space<vmem>>, %arg8: memref<32x32xf32, #tpu.memory_space<vmem>>, %arg9: memref<1x32xf32, #tpu.memory_space<vmem>>, %arg10: memref<1x8x32xf32, #tpu.memory_space<vmem>>) attributes {dimension_semantics = [#tpu.dimension_semantics<parallel>], iteration_bounds = array<i64: 2>, scalar_prefetch = 0 : i64, scratch_operands = 0 : i64, tpu.core_type = #tpu.core_type<tc>, window_params = [{transform_indices = @transform_0, window_bounds = array<i64: 1, 8, 32>}, {pipeline_mode = #tpu.pipeline_mode<synchronous>, transform_indices = @transform_1, window_bounds = array<i64: 32, 32>}, {pipeline_mode = #tpu.pipeline_mode<synchronous>, transform_indices = @transform_2, window_bounds = array<i64: 32, 32>}, {pipeline_mode = #tpu.pipeline_mode<synchronous>, transform_indices = @transform_3, window_bounds = array<i64: 32, 32>}, {pipeline_mode = #tpu.pipeline_mode<synchronous>, transform_indices = @transform_4, window_bounds = array<i64: 1, 32>}, {pipeline_mode = #tpu.pipeline_mode<synchronous>, transform_indices = @transform_5, window_bounds = array<i64: 1, 32>}, {pipeline_mode = #tpu.pipeline_mode<synchronous>, transform_indices = @transform_6, window_bounds = array<i64: 1, 32>}, {pipeline_mode = #tpu.pipeline_mode<synchronous>, transform_indices = @transform_7, window_bounds = array<i64: 32, 32>}, {pipeline_mode = #tpu.pipeline_mode<synchronous>, transform_indices = @transform_8, window_bounds = array<i64: 1, 32>}, {transform_indices = @transform_9, window_bounds = array<i64: 1, 8, 32>}]} {
    %c0 = arith.constant 0 : index
    %c0_0 = arith.constant 0 : index
    %c0_1 = arith.constant 0 : index
    %0 = vector.load %arg1[%c0, %c0_0, %c0_1] : memref<1x8x32xf32, #tpu.memory_space<vmem>>, vector<1x8x32xf32>
    %1 = vector.shape_cast %0 : vector<1x8x32xf32> to vector<8x32xf32>
    %c0_2 = arith.constant 0 : index
    %c0_3 = arith.constant 0 : index
    %2 = vector.load %arg2[%c0_2, %c0_3] : memref<32x32xf32, #tpu.memory_space<vmem>>, vector<32x32xf32>
    %cst = arith.constant dense<0.000000e+00> : vector<8x32xf32>
    %3 = tpu.matmul %1, %2, %cst {dimension_numbers = #tpu.dot_dimension_numbers<[1], [0], [0], [1], [0, 0, 1, 1], [], []>} : vector<8x32xf32>, vector<32x32xf32>, vector<8x32xf32> -> vector<8x32xf32>
    %c0_4 = arith.constant 0 : index
    %c0_5 = arith.constant 0 : index
    %4 = vector.load %arg5[%c0_4, %c0_5] : memref<1x32xf32, #tpu.memory_space<vmem>>, vector<1x32xf32>
    %5 = vector.broadcast %4 : vector<1x32xf32> to vector<8x32xf32>
    %6 = arith.addf %3, %5 : vector<8x32xf32>
    %c0_6 = arith.constant 0 : index
    %c0_7 = arith.constant 0 : index
    %7 = vector.load %arg3[%c0_6, %c0_7] : memref<32x32xf32, #tpu.memory_space<vmem>>, vector<32x32xf32>
    %cst_8 = arith.constant dense<0.000000e+00> : vector<8x32xf32>
    %8 = tpu.matmul %1, %7, %cst_8 {dimension_numbers = #tpu.dot_dimension_numbers<[1], [0], [0], [1], [0, 0, 1, 1], [], []>} : vector<8x32xf32>, vector<32x32xf32>, vector<8x32xf32> -> vector<8x32xf32>
    %c0_9 = arith.constant 0 : index
    %c0_10 = arith.constant 0 : index
    %9 = vector.load %arg6[%c0_9, %c0_10] : memref<1x32xf32, #tpu.memory_space<vmem>>, vector<1x32xf32>
    %10 = vector.broadcast %9 : vector<1x32xf32> to vector<8x32xf32>
    %11 = arith.addf %8, %10 : vector<8x32xf32>
    %c0_11 = arith.constant 0 : index
    %c0_12 = arith.constant 0 : index
    %12 = vector.load %arg4[%c0_11, %c0_12] : memref<32x32xf32, #tpu.memory_space<vmem>>, vector<32x32xf32>
    %cst_13 = arith.constant dense<0.000000e+00> : vector<8x32xf32>
    %13 = tpu.matmul %1, %12, %cst_13 {dimension_numbers = #tpu.dot_dimension_numbers<[1], [0], [0], [1], [0, 0, 1, 1], [], []>} : vector<8x32xf32>, vector<32x32xf32>, vector<8x32xf32> -> vector<8x32xf32>
    %c0_14 = arith.constant 0 : index
    %c0_15 = arith.constant 0 : index
    %14 = vector.load %arg7[%c0_14, %c0_15] : memref<1x32xf32, #tpu.memory_space<vmem>>, vector<1x32xf32>
    %15 = vector.broadcast %14 : vector<1x32xf32> to vector<8x32xf32>
    %16 = arith.addf %13, %15 : vector<8x32xf32>
    %cst_16 = arith.constant 0.353553385 : f32
    %17 = vector.broadcast %cst_16 : f32 to vector<8x32xf32>
    %18 = arith.mulf %6, %17 : vector<8x32xf32>
    %19 = tpu.iota {dimensions = array<i32: 0>} : vector<8x8xi32>
    %20 = tpu.iota {dimensions = array<i32: 1>} : vector<8x8xi32>
    %21 = arith.cmpi sle, %20, %19 : vector<8x8xi32>
    %cst_17 = arith.constant 0.000000e+00 : f32
    %cst_18 = arith.constant -1.000000e+30 : f32
    %22 = vector.broadcast %cst_17 : f32 to vector<8x8xf32>
    %23 = vector.broadcast %cst_18 : f32 to vector<8x8xf32>
    %24 = arith.select %21, %22, %23 : vector<8x8xi1>, vector<8x8xf32>
    %25 = vector.extract_strided_slice %18 {offsets = [0, 0], sizes = [8, 8], strides = [1, 1]} : vector<8x32xf32> to vector<8x8xf32>
    %26 = vector.extract_strided_slice %11 {offsets = [0, 0], sizes = [8, 8], strides = [1, 1]} : vector<8x32xf32> to vector<8x8xf32>
    %27 = vector.extract_strided_slice %16 {offsets = [0, 0], sizes = [8, 8], strides = [1, 1]} : vector<8x32xf32> to vector<8x8xf32>
    %cst_19 = arith.constant dense<0.000000e+00> : vector<8x8xf32>
    %28 = tpu.matmul %25, %26, %cst_19 {dimension_numbers = #tpu.dot_dimension_numbers<[1], [1], [0], [0], [0, 0, 1, 0], [], []>} : vector<8x8xf32>, vector<8x8xf32>, vector<8x8xf32> -> vector<8x8xf32>
    %29 = arith.addf %28, %24 : vector<8x8xf32>
    %cst_20 = arith.constant dense<0xFF800000> : vector<8xf32>
    %30 = vector.multi_reduction <maximumf>, %29, %cst_20 [1] : vector<8x8xf32> to vector<8xf32>
    %31 = vector.shape_cast %30 : vector<8xf32> to vector<8x1xf32>
    %32 = vector.broadcast %31 : vector<8x1xf32> to vector<8x8xf32>
    %33 = arith.subf %29, %32 : vector<8x8xf32>
    %34 = math.exp %33 : vector<8x8xf32>
    %cst_21 = arith.constant dense<0.000000e+00> : vector<8xf32>
    %35 = vector.multi_reduction <add>, %34, %cst_21 [1] : vector<8x8xf32> to vector<8xf32>
    %36 = vector.shape_cast %35 : vector<8xf32> to vector<8x1xf32>
    %37 = vector.broadcast %36 : vector<8x1xf32> to vector<8x8xf32>
    %38 = arith.divf %34, %37 : vector<8x8xf32>
    %cst_22 = arith.constant dense<0.000000e+00> : vector<8x8xf32>
    %39 = tpu.matmul %38, %27, %cst_22 {dimension_numbers = #tpu.dot_dimension_numbers<[1], [0], [0], [1], [0, 0, 1, 1], [], []>} : vector<8x8xf32>, vector<8x8xf32>, vector<8x8xf32> -> vector<8x8xf32>
    %c0_23 = arith.constant 0 : index
    %c0_24 = arith.constant 0 : index
    %40 = vector.load %arg8[%c0_23, %c0_24] : memref<32x32xf32, #tpu.memory_space<vmem>>, vector<8x32xf32>
    %cst_25 = arith.constant dense<0.000000e+00> : vector<8x32xf32>
    %41 = tpu.matmul %39, %40, %cst_25 {dimension_numbers = #tpu.dot_dimension_numbers<[1], [0], [0], [1], [0, 0, 1, 1], [], []>} : vector<8x8xf32>, vector<8x32xf32>, vector<8x32xf32> -> vector<8x32xf32>
    %42 = vector.extract_strided_slice %18 {offsets = [0, 8], sizes = [8, 8], strides = [1, 1]} : vector<8x32xf32> to vector<8x8xf32>
    %43 = vector.extract_strided_slice %11 {offsets = [0, 8], sizes = [8, 8], strides = [1, 1]} : vector<8x32xf32> to vector<8x8xf32>
    %44 = vector.extract_strided_slice %16 {offsets = [0, 8], sizes = [8, 8], strides = [1, 1]} : vector<8x32xf32> to vector<8x8xf32>
    %cst_26 = arith.constant dense<0.000000e+00> : vector<8x8xf32>
    %45 = tpu.matmul %42, %43, %cst_26 {dimension_numbers = #tpu.dot_dimension_numbers<[1], [1], [0], [0], [0, 0, 1, 0], [], []>} : vector<8x8xf32>, vector<8x8xf32>, vector<8x8xf32> -> vector<8x8xf32>
    %46 = arith.addf %45, %24 : vector<8x8xf32>
    %cst_27 = arith.constant dense<0xFF800000> : vector<8xf32>
    %47 = vector.multi_reduction <maximumf>, %46, %cst_27 [1] : vector<8x8xf32> to vector<8xf32>
    %48 = vector.shape_cast %47 : vector<8xf32> to vector<8x1xf32>
    %49 = vector.broadcast %48 : vector<8x1xf32> to vector<8x8xf32>
    %50 = arith.subf %46, %49 : vector<8x8xf32>
    %51 = math.exp %50 : vector<8x8xf32>
    %cst_28 = arith.constant dense<0.000000e+00> : vector<8xf32>
    %52 = vector.multi_reduction <add>, %51, %cst_28 [1] : vector<8x8xf32> to vector<8xf32>
    %53 = vector.shape_cast %52 : vector<8xf32> to vector<8x1xf32>
    %54 = vector.broadcast %53 : vector<8x1xf32> to vector<8x8xf32>
    %55 = arith.divf %51, %54 : vector<8x8xf32>
    %cst_29 = arith.constant dense<0.000000e+00> : vector<8x8xf32>
    %56 = tpu.matmul %55, %44, %cst_29 {dimension_numbers = #tpu.dot_dimension_numbers<[1], [0], [0], [1], [0, 0, 1, 1], [], []>} : vector<8x8xf32>, vector<8x8xf32>, vector<8x8xf32> -> vector<8x8xf32>
    %c8 = arith.constant 8 : index
    %c0_30 = arith.constant 0 : index
    %57 = vector.load %arg8[%c8, %c0_30] : memref<32x32xf32, #tpu.memory_space<vmem>>, vector<8x32xf32>
    %cst_31 = arith.constant dense<0.000000e+00> : vector<8x32xf32>
    %58 = tpu.matmul %56, %57, %cst_31 {dimension_numbers = #tpu.dot_dimension_numbers<[1], [0], [0], [1], [0, 0, 1, 1], [], []>} : vector<8x8xf32>, vector<8x32xf32>, vector<8x32xf32> -> vector<8x32xf32>
    %59 = arith.addf %41, %58 : vector<8x32xf32>
    %60 = vector.extract_strided_slice %18 {offsets = [0, 16], sizes = [8, 8], strides = [1, 1]} : vector<8x32xf32> to vector<8x8xf32>
    %61 = vector.extract_strided_slice %11 {offsets = [0, 16], sizes = [8, 8], strides = [1, 1]} : vector<8x32xf32> to vector<8x8xf32>
    %62 = vector.extract_strided_slice %16 {offsets = [0, 16], sizes = [8, 8], strides = [1, 1]} : vector<8x32xf32> to vector<8x8xf32>
    %cst_32 = arith.constant dense<0.000000e+00> : vector<8x8xf32>
    %63 = tpu.matmul %60, %61, %cst_32 {dimension_numbers = #tpu.dot_dimension_numbers<[1], [1], [0], [0], [0, 0, 1, 0], [], []>} : vector<8x8xf32>, vector<8x8xf32>, vector<8x8xf32> -> vector<8x8xf32>
    %64 = arith.addf %63, %24 : vector<8x8xf32>
    %cst_33 = arith.constant dense<0xFF800000> : vector<8xf32>
    %65 = vector.multi_reduction <maximumf>, %64, %cst_33 [1] : vector<8x8xf32> to vector<8xf32>
    %66 = vector.shape_cast %65 : vector<8xf32> to vector<8x1xf32>
    %67 = vector.broadcast %66 : vector<8x1xf32> to vector<8x8xf32>
    %68 = arith.subf %64, %67 : vector<8x8xf32>
    %69 = math.exp %68 : vector<8x8xf32>
    %cst_34 = arith.constant dense<0.000000e+00> : vector<8xf32>
    %70 = vector.multi_reduction <add>, %69, %cst_34 [1] : vector<8x8xf32> to vector<8xf32>
    %71 = vector.shape_cast %70 : vector<8xf32> to vector<8x1xf32>
    %72 = vector.broadcast %71 : vector<8x1xf32> to vector<8x8xf32>
    %73 = arith.divf %69, %72 : vector<8x8xf32>
    %cst_35 = arith.constant dense<0.000000e+00> : vector<8x8xf32>
    %74 = tpu.matmul %73, %62, %cst_35 {dimension_numbers = #tpu.dot_dimension_numbers<[1], [0], [0], [1], [0, 0, 1, 1], [], []>} : vector<8x8xf32>, vector<8x8xf32>, vector<8x8xf32> -> vector<8x8xf32>
    %c16 = arith.constant 16 : index
    %c0_36 = arith.constant 0 : index
    %75 = vector.load %arg8[%c16, %c0_36] : memref<32x32xf32, #tpu.memory_space<vmem>>, vector<8x32xf32>
    %cst_37 = arith.constant dense<0.000000e+00> : vector<8x32xf32>
    %76 = tpu.matmul %74, %75, %cst_37 {dimension_numbers = #tpu.dot_dimension_numbers<[1], [0], [0], [1], [0, 0, 1, 1], [], []>} : vector<8x8xf32>, vector<8x32xf32>, vector<8x32xf32> -> vector<8x32xf32>
    %77 = arith.addf %59, %76 : vector<8x32xf32>
    %78 = vector.extract_strided_slice %18 {offsets = [0, 24], sizes = [8, 8], strides = [1, 1]} : vector<8x32xf32> to vector<8x8xf32>
    %79 = vector.extract_strided_slice %11 {offsets = [0, 24], sizes = [8, 8], strides = [1, 1]} : vector<8x32xf32> to vector<8x8xf32>
    %80 = vector.extract_strided_slice %16 {offsets = [0, 24], sizes = [8, 8], strides = [1, 1]} : vector<8x32xf32> to vector<8x8xf32>
    %cst_38 = arith.constant dense<0.000000e+00> : vector<8x8xf32>
    %81 = tpu.matmul %78, %79, %cst_38 {dimension_numbers = #tpu.dot_dimension_numbers<[1], [1], [0], [0], [0, 0, 1, 0], [], []>} : vector<8x8xf32>, vector<8x8xf32>, vector<8x8xf32> -> vector<8x8xf32>
    %82 = arith.addf %81, %24 : vector<8x8xf32>
    %cst_39 = arith.constant dense<0xFF800000> : vector<8xf32>
    %83 = vector.multi_reduction <maximumf>, %82, %cst_39 [1] : vector<8x8xf32> to vector<8xf32>
    %84 = vector.shape_cast %83 : vector<8xf32> to vector<8x1xf32>
    %85 = vector.broadcast %84 : vector<8x1xf32> to vector<8x8xf32>
    %86 = arith.subf %82, %85 : vector<8x8xf32>
    %87 = math.exp %86 : vector<8x8xf32>
    %cst_40 = arith.constant dense<0.000000e+00> : vector<8xf32>
    %88 = vector.multi_reduction <add>, %87, %cst_40 [1] : vector<8x8xf32> to vector<8xf32>
    %89 = vector.shape_cast %88 : vector<8xf32> to vector<8x1xf32>
    %90 = vector.broadcast %89 : vector<8x1xf32> to vector<8x8xf32>
    %91 = arith.divf %87, %90 : vector<8x8xf32>
    %cst_41 = arith.constant dense<0.000000e+00> : vector<8x8xf32>
    %92 = tpu.matmul %91, %80, %cst_41 {dimension_numbers = #tpu.dot_dimension_numbers<[1], [0], [0], [1], [0, 0, 1, 1], [], []>} : vector<8x8xf32>, vector<8x8xf32>, vector<8x8xf32> -> vector<8x8xf32>
    %c24 = arith.constant 24 : index
    %c0_42 = arith.constant 0 : index
    %93 = vector.load %arg8[%c24, %c0_42] : memref<32x32xf32, #tpu.memory_space<vmem>>, vector<8x32xf32>
    %cst_43 = arith.constant dense<0.000000e+00> : vector<8x32xf32>
    %94 = tpu.matmul %92, %93, %cst_43 {dimension_numbers = #tpu.dot_dimension_numbers<[1], [0], [0], [1], [0, 0, 1, 1], [], []>} : vector<8x8xf32>, vector<8x32xf32>, vector<8x32xf32> -> vector<8x32xf32>
    %95 = arith.addf %77, %94 : vector<8x32xf32>
    %c0_44 = arith.constant 0 : index
    %c0_45 = arith.constant 0 : index
    %96 = vector.load %arg9[%c0_44, %c0_45] : memref<1x32xf32, #tpu.memory_space<vmem>>, vector<1x32xf32>
    %97 = vector.broadcast %96 : vector<1x32xf32> to vector<8x32xf32>
    %98 = arith.addf %95, %97 : vector<8x32xf32>
    %c0_46 = arith.constant 0 : index
    %c0_47 = arith.constant 0 : index
    %c0_48 = arith.constant 0 : index
    %99 = vector.load %arg10[%c0_46, %c0_47, %c0_48] : memref<1x8x32xf32, #tpu.memory_space<vmem>>, vector<1x8x32xf32>
    %100 = vector.shape_cast %99 : vector<1x8x32xf32> to vector<8x32xf32>
    %101 = vector.shape_cast %98 : vector<8x32xf32> to vector<1x8x32xf32>
    tpu.vector_store %arg10[%c0_46, %c0_47, %c0_48], %101 {strides = array<i32>} : memref<1x8x32xf32, #tpu.memory_space<vmem>>, vector<1x8x32xf32>,
    return
  }
  func.func @transform_0(%arg0: i32) -> (i32, i32, i32) {
    %c0_i32 = arith.constant 0 : i32
    %c0_i32_0 = arith.constant 0 : i32
    %c0_i32_1 = arith.constant 0 : i32
    return %arg0, %c0_i32, %c0_i32_0 : i32, i32, i32
  }
  func.func @transform_1(%arg0: i32) -> (i32, i32) {
    %c0_i32 = arith.constant 0 : i32
    %c0_i32_0 = arith.constant 0 : i32
    %c0_i32_1 = arith.constant 0 : i32
    return %c0_i32, %c0_i32_0 : i32, i32
  }
  func.func @transform_2(%arg0: i32) -> (i32, i32) {
    %c0_i32 = arith.constant 0 : i32
    %c0_i32_0 = arith.constant 0 : i32
    %c0_i32_1 = arith.constant 0 : i32
    return %c0_i32, %c0_i32_0 : i32, i32
  }
  func.func @transform_3(%arg0: i32) -> (i32, i32) {
    %c0_i32 = arith.constant 0 : i32
    %c0_i32_0 = arith.constant 0 : i32
    %c0_i32_1 = arith.constant 0 : i32
    return %c0_i32, %c0_i32_0 : i32, i32
  }
  func.func @transform_4(%arg0: i32) -> (i32, i32) {
    %c0_i32 = arith.constant 0 : i32
    %c0_i32_0 = arith.constant 0 : i32
    %c0_i32_1 = arith.constant 0 : i32
    return %c0_i32, %c0_i32_0 : i32, i32
  }
  func.func @transform_5(%arg0: i32) -> (i32, i32) {
    %c0_i32 = arith.constant 0 : i32
    %c0_i32_0 = arith.constant 0 : i32
    %c0_i32_1 = arith.constant 0 : i32
    return %c0_i32, %c0_i32_0 : i32, i32
  }
  func.func @transform_6(%arg0: i32) -> (i32, i32) {
    %c0_i32 = arith.constant 0 : i32
    %c0_i32_0 = arith.constant 0 : i32
    %c0_i32_1 = arith.constant 0 : i32
    return %c0_i32, %c0_i32_0 : i32, i32
  }
  func.func @transform_7(%arg0: i32) -> (i32, i32) {
    %c0_i32 = arith.constant 0 : i32
    %c0_i32_0 = arith.constant 0 : i32
    %c0_i32_1 = arith.constant 0 : i32
    return %c0_i32, %c0_i32_0 : i32, i32
  }
  func.func @transform_8(%arg0: i32) -> (i32, i32) {
    %c0_i32 = arith.constant 0 : i32
    %c0_i32_0 = arith.constant 0 : i32
    %c0_i32_1 = arith.constant 0 : i32
    return %c0_i32, %c0_i32_0 : i32, i32
  }
  func.func @transform_9(%arg0: i32) -> (i32, i32, i32) {
    %c0_i32 = arith.constant 0 : i32
    %c0_i32_0 = arith.constant 0 : i32
    %c0_i32_1 = arith.constant 0 : i32
    return %arg0, %c0_i32, %c0_i32_0 : i32, i32, i32
  }
}

</mosaic_0001>

<llo_original>
// kernel: tpu_custom_call.1
$region0: #{tpu_custom_call.1}
  #allocation0 [shape = 'u32[]', space=smem, size = 0x4, offset = 0x4, fixed_abs, tag = 'smem constant byte address 0x4 - core index']
  #allocation1 [shape = 'u32[144,128]{1,0:T(1,128)}', space=vmem, size = 0x12000, scoped, tag = 'internal scratch']
  %s0 = inlined_call_operand.hbm [shape: f32[2,8,32], index: 0, kind: input, shape index: {}]
  %s1 = inlined_call_operand.hbm [shape: f32[32,32], index: 1, kind: input, shape index: {}]
  %s2 = inlined_call_operand.hbm [shape: f32[32,32], index: 2, kind: input, shape index: {}]
  %s3 = inlined_call_operand.hbm [shape: f32[32,32], index: 3, kind: input, shape index: {}]
  %s4 = inlined_call_operand.vmem [shape: f32[1,32], index: 4, kind: input, shape index: {}]
  %s5 = inlined_call_operand.vmem [shape: f32[1,32], index: 5, kind: input, shape index: {}]
  %s6 = inlined_call_operand.vmem [shape: f32[1,32], index: 6, kind: input, shape index: {}]
  %s7 = inlined_call_operand.hbm [shape: f32[32,32], index: 7, kind: input, shape index: {}]
  %s8 = inlined_call_operand.vmem [shape: f32[1,32], index: 8, kind: input, shape index: {}]
  %s9 = inlined_call_operand.hbm [shape: f32[2,8,32], index: 9, kind: output, shape index: {}]
  %s10 = sld [smem:[#allocation0]]
  $region89: #{tpu_custom_call.1} parent=0
    _
  %s12 = ssub.s32 1, %s10
  %s13 = scalar_select 0, %s12, %s10
  $region1: #{tpu_custom_call.1} parent=0
    #allocation2 [shape = 'u8[8192]{0}', space=vmem, size = 0x2000, scoped, tag = 'input window, operand 0']
    #allocation3 [shape = 's32[2]{0}', space=sflag, size = 0x8, scoped, tag = 'scoped memory for tpu_custom_call.1']
    #allocation4 [shape = 's32[2]{0}', space=sflag, size = 0x8, scoped, tag = 'scoped memory for tpu_custom_call.1']
    #allocation5 [shape = 'u8[16384]{0}', space=vmem, size = 0x4000, scoped, tag = 'input window, operand 1, single buffered']
    #allocation6 [shape = 's32[1]{0}', space=sflag, size = 0x4, scoped, tag = 'scoped memory for tpu_custom_call.1']
    #allocation7 [shape = 'u8[16384]{0}', space=vmem, size = 0x4000, scoped, tag = 'input window, operand 2, single buffered']
    #allocation8 [shape = 'u8[16384]{0}', space=vmem, size = 0x4000, scoped, tag = 'input window, operand 3, single buffered']
    #allocation9 [shape = 's32[1]{0}', space=sflag, size = 0x4, scoped, tag = 'scoped memory for tpu_custom_call.1']
    #allocation10 [shape = 'u8[16384]{0}', space=vmem, size = 0x4000, scoped, tag = 'input window, operand 7, single buffered']
    #allocation11 [shape = 'u8[8192]{0}', space=vmem, size = 0x2000, scoped, tag = 'output window, operand 0']
    %14 = vsyncpa [#allocation3], 0
    %s15 = scalar_lea.sflag [#allocation3], 1
    %16 = vsyncpa %s15, 0
    %17 = vsyncpa [#allocation6], 0
    %18 = vsyncpa [#allocation9], 0
    %19 = vsyncpa [#allocation4], 0
    %s20 = scalar_lea.sflag [#allocation4], 1
    %21 = vsyncpa %s20, 0
    loop: start=0, step=1, limit=4
    $region2: #{tpu_custom_call.1} parent=1 // loop_pre_header
      _
    $region3: #{tpu_custom_call.1} parent=1 // loop_header
      %s23 = sphi 0, %s27
      %p24 = scmp.ge.s32.totalorder %s23, 4
      %s33 = sphi 0, %s35
      %s36 = sphi 0, %s33
      %s37 = sphi 0, %s36
      %s53 = sphi 0, %s37
      %s57 = sphi 0, %s57
      %s59 = sphi 0, %s57
      %s60 = sphi 0, %s59
      %s74 = sphi 0, %s60
      %s78 = sphi 0, %s78
      %s80 = sphi 0, %s78
      %s81 = sphi 0, %s80
      %s95 = sphi 0, %s81
      %s99 = sphi 0, %s99
      %s101 = sphi 0, %s99
      %s102 = sphi 0, %s101
      %s116 = sphi 0, %s102
      %s120 = sphi 0, %s120
      %s122 = sphi 0, %s120
      %s123 = sphi 0, %s122
      %s137 = sphi 0, %s123
      %s141 = sphi 0, %s141
      %s143 = sphi 0, %s141
      %s144 = sphi 0, %s143
      %s158 = sphi 0, %s144
      %s162 = sphi 0, %s162
      %s164 = sphi 0, %s162
      %s165 = sphi 0, %s164
      %s179 = sphi 0, %s165
      %s183 = sphi 0, %s183
      %s185 = sphi 0, %s183
      %s186 = sphi 0, %s185
      %s200 = sphi 0, %s186
      %s204 = sphi 0, %s204
      %s206 = sphi 0, %s204
      %s207 = sphi 0, %s206
      %s221 = sphi 0, %s207
      %s227 = sphi 0, %s229
      %s230 = sphi 0, %s227
      %s231 = sphi 0, %s230
      %s247 = sphi 0, %s231
    $region4: #{tpu_custom_call.1} parent=1 // loop_header_branch
      %26 = sbr.rel (%p24) target = $region8
    $region5: #{tpu_custom_call.1} parent=1 // loop_body
      %s28 = ssub.s32 %s23, 1
      %s29 = ssub.s32 %s23, 2
      %s30 = sadd.s32 %s23, 1
      %s31 = ssub.s32 %s23, %s30
      %p32 = scmp.eq.s32.totalorder %s31, 0
      %s34 = sadd.s32 %s33, 1
      %s35 = scalar_select %p32, %s33, %s34
      %p38 = pneg %p32
      %p39 = scmp.eq.s32.totalorder %s23, 1
      %p40 = por %p38, %p39
      %p41 = scmp.ne.s32.totalorder %s33, %s36
      %p42 = scmp.eq.s32.totalorder %s23, 0
      %p43 = por %p41, %p42
      %p44 = scmp.ne.s32.totalorder %s33, %s36
      %p45 = scmp.eq.s32.totalorder %s28, 1
      %p46 = por %p44, %p45
      %p47 = scmp.ne.s32.totalorder %s36, %s37
      %p48 = scmp.eq.s32.totalorder %s28, 0
      %p49 = por %p47, %p48
      %p50 = scmp.ne.s32.totalorder %s36, %s37
      %p51 = scmp.eq.s32.totalorder %s29, 1
      %p52 = por %p50, %p51
      %p54 = scmp.ne.s32.totalorder %s37, %s53
      %p55 = scmp.eq.s32.totalorder %s29, 0
      %p56 = por %p54, %p55
      %s58 = sadd.s32 %s57, 1
      %p61 = scmp.eq.s32.totalorder %s23, 1
      %p62 = scmp.ne.s32.totalorder %s57, %s59
      %p63 = scmp.eq.s32.totalorder %s23, 0
      %p64 = por %p62, %p63
      %p65 = scmp.ne.s32.totalorder %s57, %s59
      %p66 = scmp.eq.s32.totalorder %s28, 1
      %p67 = por %p65, %p66
      %p68 = scmp.ne.s32.totalorder %s59, %s60
      %p69 = scmp.eq.s32.totalorder %s28, 0
      %p70 = por %p68, %p69
      %p71 = scmp.ne.s32.totalorder %s59, %s60
      %p72 = scmp.eq.s32.totalorder %s29, 1
      %p73 = por %p71, %p72
      %p75 = scmp.ne.s32.totalorder %s60, %s74
      %p76 = scmp.eq.s32.totalorder %s29, 0
      %p77 = por %p75, %p76
      %s79 = sadd.s32 %s78, 1
      %p82 = scmp.eq.s32.totalorder %s23, 1
      %p83 = scmp.ne.s32.totalorder %s78, %s80
      %p84 = scmp.eq.s32.totalorder %s23, 0
      %p85 = por %p83, %p84
      %p86 = scmp.ne.s32.totalorder %s78, %s80
      %p87 = scmp.eq.s32.totalorder %s28, 1
      %p88 = por %p86, %p87
      %p89 = scmp.ne.s32.totalorder %s80, %s81
      %p90 = scmp.eq.s32.totalorder %s28, 0
      %p91 = por %p89, %p90
      %p92 = scmp.ne.s32.totalorder %s80, %s81
      %p93 = scmp.eq.s32.totalorder %s29, 1
      %p94 = por %p92, %p93
      %p96 = scmp.ne.s32.totalorder %s81, %s95
      %p97 = scmp.eq.s32.totalorder %s29, 0
      %p98 = por %p96, %p97
      %s100 = sadd.s32 %s99, 1
      %p103 = scmp.eq.s32.totalorder %s23, 1
      %p104 = scmp.ne.s32.totalorder %s99, %s101
      %p105 = scmp.eq.s32.totalorder %s23, 0
      %p106 = por %p104, %p105
      %p107 = scmp.ne.s32.totalorder %s99, %s101
      %p108 = scmp.eq.s32.totalorder %s28, 1
      %p109 = por %p107, %p108
      %p110 = scmp.ne.s32.totalorder %s101, %s102
      %p111 = scmp.eq.s32.totalorder %s28, 0
      %p112 = por %p110, %p111
      %p113 = scmp.ne.s32.totalorder %s101, %s102
      %p114 = scmp.eq.s32.totalorder %s29, 1
      %p115 = por %p113, %p114
      %p117 = scmp.ne.s32.totalorder %s102, %s116
      %p118 = scmp.eq.s32.totalorder %s29, 0
      %p119 = por %p117, %p118
      %s121 = sadd.s32 %s120, 1
      %p124 = scmp.eq.s32.totalorder %s23, 1
      %p125 = scmp.ne.s32.totalorder %s120, %s122
      %p126 = scmp.eq.s32.totalorder %s23, 0
      %p127 = por %p125, %p126
      %p128 = scmp.ne.s32.totalorder %s120, %s122
      %p129 = scmp.eq.s32.totalorder %s28, 1
      %p130 = por %p128, %p129
      %p131 = scmp.ne.s32.totalorder %s122, %s123
      %p132 = scmp.eq.s32.totalorder %s28, 0
      %p133 = por %p131, %p132
      %p134 = scmp.ne.s32.totalorder %s122, %s123
      %p135 = scmp.eq.s32.totalorder %s29, 1
      %p136 = por %p134, %p135
      %p138 = scmp.ne.s32.totalorder %s123, %s137
      %p139 = scmp.eq.s32.totalorder %s29, 0
      %p140 = por %p138, %p139
      %s142 = sadd.s32 %s141, 1
      %p145 = scmp.eq.s32.totalorder %s23, 1
      %p146 = scmp.ne.s32.totalorder %s141, %s143
      %p147 = scmp.eq.s32.totalorder %s23, 0
      %p148 = por %p146, %p147
      %p149 = scmp.ne.s32.totalorder %s141, %s143
      %p150 = scmp.eq.s32.totalorder %s28, 1
      %p151 = por %p149, %p150
      %p152 = scmp.ne.s32.totalorder %s143, %s144
      %p153 = scmp.eq.s32.totalorder %s28, 0
      %p154 = por %p152, %p153
      %p155 = scmp.ne.s32.totalorder %s143, %s144
      %p156 = scmp.eq.s32.totalorder %s29, 1
      %p157 = por %p155, %p156
      %p159 = scmp.ne.s32.totalorder %s144, %s158
      %p160 = scmp.eq.s32.totalorder %s29, 0
      %p161 = por %p159, %p160
      %s163 = sadd.s32 %s162, 1
      %p166 = scmp.eq.s32.totalorder %s23, 1
      %p167 = scmp.ne.s32.totalorder %s162, %s164
      %p168 = scmp.eq.s32.totalorder %s23, 0
      %p169 = por %p167, %p168
      %p170 = scmp.ne.s32.totalorder %s162, %s164
      %p171 = scmp.eq.s32.totalorder %s28, 1
      %p172 = por %p170, %p171
      %p173 = scmp.ne.s32.totalorder %s164, %s165
      %p174 = scmp.eq.s32.totalorder %s28, 0
      %p175 = por %p173, %p174
      %p176 = scmp.ne.s32.totalorder %s164, %s165
      %p177 = scmp.eq.s32.totalorder %s29, 1
      %p178 = por %p176, %p177
      %p180 = scmp.ne.s32.totalorder %s165, %s179
      %p181 = scmp.eq.s32.totalorder %s29, 0
      %p182 = por %p180, %p181
      %s184 = sadd.s32 %s183, 1
      %p187 = scmp.eq.s32.totalorder %s23, 1
      %p188 = scmp.ne.s32.totalorder %s183, %s185
      %p189 = scmp.eq.s32.totalorder %s23, 0
      %p190 = por %p188, %p189
      %p191 = scmp.ne.s32.totalorder %s183, %s185
      %p192 = scmp.eq.s32.totalorder %s28, 1
      %p193 = por %p191, %p192
      %p194 = scmp.ne.s32.totalorder %s185, %s186
      %p195 = scmp.eq.s32.totalorder %s28, 0
      %p196 = por %p194, %p195
      %p197 = scmp.ne.s32.totalorder %s185, %s186
      %p198 = scmp.eq.s32.totalorder %s29, 1
      %p199 = por %p197, %p198
      %p201 = scmp.ne.s32.totalorder %s186, %s200
      %p202 = scmp.eq.s32.totalorder %s29, 0
      %p203 = por %p201, %p202
      %s205 = sadd.s32 %s204, 1
      %p208 = scmp.eq.s32.totalorder %s23, 1
      %p209 = scmp.ne.s32.totalorder %s204, %s206
      %p210 = scmp.eq.s32.totalorder %s23, 0
      %p211 = por %p209, %p210
      %p212 = scmp.ne.s32.totalorder %s204, %s206
      %p213 = scmp.eq.s32.totalorder %s28, 1
      %p214 = por %p212, %p213
      %p215 = scmp.ne.s32.totalorder %s206, %s207
      %p216 = scmp.eq.s32.totalorder %s28, 0
      %p217 = por %p215, %p216
      %p218 = scmp.ne.s32.totalorder %s206, %s207
      %p219 = scmp.eq.s32.totalorder %s29, 1
      %p220 = por %p218, %p219
      %p222 = scmp.ne.s32.totalorder %s207, %s221
      %p223 = scmp.eq.s32.totalorder %s29, 0
      %p224 = por %p222, %p223
      %s225 = ssub.s32 %s23, %s30
      %p226 = scmp.eq.s32.totalorder %s225, 0
      %s228 = sadd.s32 %s227, 1
      %s229 = scalar_select %p226, %s227, %s228
      %p232 = pneg %p226
      %p233 = scmp.eq.s32.totalorder %s23, 1
      %p234 = por %p232, %p233
      %p235 = scmp.ne.s32.totalorder %s227, %s230
      %p236 = scmp.eq.s32.totalorder %s23, 0
      %p237 = por %p235, %p236
      %p238 = scmp.ne.s32.totalorder %s227, %s230
      %p239 = scmp.eq.s32.totalorder %s28, 1
      %p240 = por %p238, %p239
      %p241 = scmp.ne.s32.totalorder %s230, %s231
      %p242 = scmp.eq.s32.totalorder %s28, 0
      %p243 = por %p241, %p242
      %p244 = scmp.ne.s32.totalorder %s230, %s231
      %p245 = scmp.eq.s32.totalorder %s29, 1
      %p246 = por %p244, %p245
      %p248 = scmp.ne.s32.totalorder %s231, %s247
      %p249 = scmp.eq.s32.totalorder %s29, 0
      %p250 = por %p248, %p249
      %p251 = scmp.le.s32.totalorder 1, %s23
      %p252 = scmp.lt.s32.totalorder %s23, 3
      %p253 = pnand %p251, %p252
      %p254 = pneg %p253
      // Predicated region
      $region9: #{tpu_custom_call.1} parent=5 // pred_check
        _
      $region10: #{tpu_custom_call.1} parent=5 // pred_check_branch
        %256 = sbr.rel (%p253) target = $region12
      $region11: #{tpu_custom_call.1} parent=5 // pred_region
        %s257 = ssub.s32 %s23, 1
        // Predicated region
        $region13: #{tpu_custom_call.1} parent=11 // pred_check
          %p258 = pneg %p70
        $region14: #{tpu_custom_call.1} parent=11 // pred_check_branch
          %260 = sbr.rel (%p258) target = $region16
        $region15: #{tpu_custom_call.1} parent=11 // pred_region
          %s262 = ssub.s32 512, 512
          %263 = vsyncadd [#allocation6], %s262
          %s264 = sshll.u32 [#allocation5], 4
          %s265 = int_to_ptr.vmem [resolvable:$true] %s264
          %270 = dma.hbm_to_vmem [thread:$0]  %s1, 512, %s265, [#allocation6], 128, 128, 8
        $region16: #{tpu_custom_call.1} parent=11 // pred_fallthru
          _
        // Predicated region
        $region17: #{tpu_custom_call.1} parent=11 // pred_check
          %p271 = pneg %p91
        $region18: #{tpu_custom_call.1} parent=11 // pred_check_branch
          %273 = sbr.rel (%p271) target = $region20
        $region19: #{tpu_custom_call.1} parent=11 // pred_region
          %s275 = ssub.s32 512, 512
          %276 = vsyncadd [#allocation6], %s275
          %s277 = sshll.u32 [#allocation7], 4
          %s278 = int_to_ptr.vmem [resolvable:$true] %s277
          %283 = dma.hbm_to_vmem [thread:$0]  %s2, 512, %s278, [#allocation6], 128, 128, 8
        $region20: #{tpu_custom_call.1} parent=11 // pred_fallthru
          _
        // Predicated region
        $region21: #{tpu_custom_call.1} parent=11 // pred_check
          %p284 = pneg %p112
        $region22: #{tpu_custom_call.1} parent=11 // pred_check_branch
          %286 = sbr.rel (%p284) target = $region24
        $region23: #{tpu_custom_call.1} parent=11 // pred_region
          %s288 = ssub.s32 512, 512
          %289 = vsyncadd [#allocation9], %s288
          %s290 = sshll.u32 [#allocation8], 4
          %s291 = int_to_ptr.vmem [resolvable:$true] %s290
          %296 = dma.hbm_to_vmem [thread:$0]  %s3, 512, %s291, [#allocation9], 128, 128, 8
        $region24: #{tpu_custom_call.1} parent=11 // pred_fallthru
          _
        // Predicated region
        $region25: #{tpu_custom_call.1} parent=11 // pred_check
          %p297 = pneg %p133
        $region26: #{tpu_custom_call.1} parent=11 // pred_check_branch
          %299 = sbr.rel (%p297) target = $region28
        $region27: #{tpu_custom_call.1} parent=11 // pred_region
          _
        $region28: #{tpu_custom_call.1} parent=11 // pred_fallthru
          _
        // Predicated region
        $region29: #{tpu_custom_call.1} parent=11 // pred_check
          %p300 = pneg %p154
        $region30: #{tpu_custom_call.1} parent=11 // pred_check_branch
          %302 = sbr.rel (%p300) target = $region32
        $region31: #{tpu_custom_call.1} parent=11 // pred_region
          _
        $region32: #{tpu_custom_call.1} parent=11 // pred_fallthru
          _
        // Predicated region
        $region33: #{tpu_custom_call.1} parent=11 // pred_check
          %p303 = pneg %p175
        $region34: #{tpu_custom_call.1} parent=11 // pred_check_branch
          %305 = sbr.rel (%p303) target = $region36
        $region35: #{tpu_custom_call.1} parent=11 // pred_region
          _
        $region36: #{tpu_custom_call.1} parent=11 // pred_fallthru
          _
        // Predicated region
        $region37: #{tpu_custom_call.1} parent=11 // pred_check
          %p306 = pneg %p196
        $region38: #{tpu_custom_call.1} parent=11 // pred_check_branch
          %308 = sbr.rel (%p306) target = $region40
        $region39: #{tpu_custom_call.1} parent=11 // pred_region
          %s310 = ssub.s32 512, 512
          %311 = vsyncadd [#allocation9], %s310
          %s312 = sshll.u32 [#allocation10], 4
          %s313 = int_to_ptr.vmem [resolvable:$true] %s312
          %318 = dma.hbm_to_vmem [thread:$0]  %s7, 512, %s313, [#allocation9], 128, 128, 8
        $region40: #{tpu_custom_call.1} parent=11 // pred_fallthru
          _
        // Predicated region
        $region41: #{tpu_custom_call.1} parent=11 // pred_check
          %p319 = pneg %p217
        $region42: #{tpu_custom_call.1} parent=11 // pred_check_branch
          %321 = sbr.rel (%p319) target = $region44
        $region43: #{tpu_custom_call.1} parent=11 // pred_region
          _
        $region44: #{tpu_custom_call.1} parent=11 // pred_fallthru
          _
      $region12: #{tpu_custom_call.1} parent=5 // pred_fallthru
        _
      %p322 = scmp.lt.s32.totalorder %s23, 2
      // Predicated region
      $region45: #{tpu_custom_call.1} parent=5 // pred_check
        %p323 = pneg %p322
      $region46: #{tpu_custom_call.1} parent=5 // pred_check_branch
        %325 = sbr.rel (%p323) target = $region48
      $region47: #{tpu_custom_call.1} parent=5 // pred_region
        // Predicated region
        $region49: #{tpu_custom_call.1} parent=47 // pred_check
          %p326 = pneg %p43
        $region50: #{tpu_custom_call.1} parent=47 // pred_check_branch
          %328 = sbr.rel (%p326) target = $region52
        $region51: #{tpu_custom_call.1} parent=47 // pred_region
          %s329 = sand.u32 %s33, 1
          %s330 = scalar_lea.sflag [#allocation3], %s329
          %s331 = sand.u32 %s33, 1
          %s332 = smul.addr %s331, 8
          %s333 = scalar_lea.vmem [#allocation2], %s332
          %s335 = ssub.s32 128, 128
          %336 = vsyncadd %s330, %s335
          %s337 = smul.addr %s23, 128
          %s338 = scalar_lea.hbm %s0, %s337
          %s340 = sshll.u32 %s333, 4
          %s341 = int_to_ptr.vmem [resolvable:$true] %s340
          %343 = dma.hbm_to_vmem [thread:$0]  %s338, 128, %s341, %s330
        $region52: #{tpu_custom_call.1} parent=47 // pred_fallthru
          _
      $region48: #{tpu_custom_call.1} parent=5 // pred_fallthru
        _
      %p344 = scmp.le.s32.totalorder 1, %s23
      %p345 = scmp.lt.s32.totalorder %s23, 3
      %p346 = pnand %p344, %p345
      %p347 = pneg %p346
      // Predicated region
      $region53: #{tpu_custom_call.1} parent=5 // pred_check
        _
      $region54: #{tpu_custom_call.1} parent=5 // pred_check_branch
        %349 = sbr.rel (%p346) target = $region56
      $region55: #{tpu_custom_call.1} parent=5 // pred_region
        %s350 = ssub.s32 %s23, 1
        %s351 = sand.u32 %s36, 1
        %s352 = scalar_lea.sflag [#allocation3], %s351
        %s353 = sand.u32 %s36, 1
        %s354 = smul.addr %s353, 8
        %s355 = scalar_lea.vmem [#allocation2], %s354
        // Predicated region
        $region57: #{tpu_custom_call.1} parent=55 // pred_check
          %p356 = pneg %p49
        $region58: #{tpu_custom_call.1} parent=55 // pred_check_branch
          %358 = sbr.rel (%p356) target = $region60
        $region59: #{tpu_custom_call.1} parent=55 // pred_region
          %359 = dma.done %s352, 128
        $region60: #{tpu_custom_call.1} parent=55 // pred_fallthru
          _
        // Predicated region
        $region61: #{tpu_custom_call.1} parent=55 // pred_check
          %p360 = pneg %p70
        $region62: #{tpu_custom_call.1} parent=55 // pred_check_branch
          %362 = sbr.rel (%p360) target = $region64
        $region63: #{tpu_custom_call.1} parent=55 // pred_region
          %363 = dma.done [#allocation6], 512
        $region64: #{tpu_custom_call.1} parent=55 // pred_fallthru
          _
        // Predicated region
        $region65: #{tpu_custom_call.1} parent=55 // pred_check
          %p364 = pneg %p91
        $region66: #{tpu_custom_call.1} parent=55 // pred_check_branch
          %366 = sbr.rel (%p364) target = $region68
        $region67: #{tpu_custom_call.1} parent=55 // pred_region
          %367 = dma.done [#allocation6], 512
        $region68: #{tpu_custom_call.1} parent=55 // pred_fallthru
          _
        // Predicated region
        $region69: #{tpu_custom_call.1} parent=55 // pred_check
          %p368 = pneg %p112
        $region70: #{tpu_custom_call.1} parent=55 // pred_check_branch
          %370 = sbr.rel (%p368) target = $region72
        $region71: #{tpu_custom_call.1} parent=55 // pred_region
          %371 = dma.done [#allocation9], 512
        $region72: #{tpu_custom_call.1} parent=55 // pred_fallthru
          _
        // Predicated region
        $region73: #{tpu_custom_call.1} parent=55 // pred_check
          %p372 = pneg %p196
        $region74: #{tpu_custom_call.1} parent=55 // pred_check_branch
          %374 = sbr.rel (%p372) target = $region76
        $region75: #{tpu_custom_call.1} parent=55 // pred_region
          %375 = dma.done [#allocation9], 512
        $region76: #{tpu_custom_call.1} parent=55 // pred_fallthru
          _
        %s376 = sand.u32 %s36, 1
        %s377 = scalar_lea.sflag [#allocation3], %s376
        %s378 = sand.u32 %s36, 1
        %s379 = smul.addr %s378, 8
        %s380 = scalar_lea.vmem [#allocation2], %s379
        %p381 = pneg %p49
        %p382 = pneg %p46
        %p383 = pneg %p70
        %p384 = pneg %p67
        %p385 = pneg %p91
        %p386 = pneg %p88
        %p387 = pneg %p112
        %p388 = pneg %p109
        %p389 = pneg %p133
        %p390 = pneg %p130
        %p391 = pneg %p154
        %p392 = pneg %p151
        %p393 = pneg %p175
        %p394 = pneg %p172
        %p395 = pneg %p196
        %p396 = pneg %p193
        %p397 = pneg %p217
        %p398 = pneg %p214
        %p399 = pneg %p243
        %p400 = pneg %p240
        %s401 = sand.u32 %s230, 1
        %s402 = scalar_lea.sflag [#allocation4], %s401
        %s403 = sand.u32 %s230, 1
        %s404 = smul.addr %s403, 8
        %s405 = scalar_lea.vmem [#allocation11], %s404
        %v406 = vld [vmem:[%s355] sm:$0xff]
        %v407 = vld [vmem:[#allocation5] sm:$0xff]
        %v408 = vld [vmem:[#allocation5 + $0x8] sm:$0xff]
        %v409 = vld [vmem:[#allocation5 + $0x10] sm:$0xff]
        %v410 = vld [vmem:[#allocation5 + $0x18] sm:$0xff]
        %v411 = vld [vmem:[%s4] sm:$0x1]
        %v413 = vlaneseq
        %v414 = vshrl.u32 %v413, 7
        %v415 = vsub.s32 0, %v414
        %v416 = vrot.slane %v411, %v415
        %vm418 = vcmask 261120
        %v420 = vsel %vm418, %v406, 0
        %422 = vmatprep.subr.mxu0 0.0
        %423 = vmatpush1.msra.mxu0 %v407
        %424 = vmatprep.subr.mxu0 0.0
        %425 = vmatpush1.msra.mxu0 %v408
        %426 = vmatprep.subr.mxu0 0.0
        %427 = vmatpush1.msra.mxu0 %v409
        %428 = vmatprep.subr.mxu0 0.0
        %429 = vmatpush1.msra.mxu0 %v410
        %430 = vmatprep.subr.mxu0 0.0
        %431 = vmatpush1.msra.mxu0 0.0
        %432 = vmatprep.subr.mxu0 0.0
        %433 = vmatpush1.msra.mxu0 0.0
        %434 = vmatprep.subr.mxu0 0.0
        %435 = vmatpush1.msra.mxu0 0.0
        %436 = vmatprep.subr.mxu0 0.0
        %437 = vmatpush1.msra.mxu0 0.0
        %438 = vmatprep.subr.mxu0 0.0
        %439 = vmatpush1.msra.mxu0 0.0
        %440 = vmatprep.subr.mxu0 0.0
        %441 = vmatpush1.msra.mxu0 0.0
        %442 = vmatprep.subr.mxu0 0.0
        %443 = vmatpush1.msra.mxu0 0.0
        %444 = vmatprep.subr.mxu0 0.0
        %445 = vmatpush1.msra.mxu0 0.0
        %446 = vmatprep.subr.mxu0 0.0
        %447 = vmatpush1.msra.mxu0 0.0
        %448 = vmatprep.subr.mxu0 0.0
        %449 = vmatpush1.msra.mxu0 0.0
        %450 = vmatprep.subr.mxu0 0.0
        %451 = vmatpush1.msra.mxu0 0.0
        %452 = vmatprep.subr.mxu0 0.0
        %453 = vmatpush1.msra.mxu0 0.0
        %454 = vmatprep.subr.mxu0 0.0
        %455 = vmatpush1.msra.mxu0 0.0
        %456 = vmatprep.subr.mxu0 0.0
        %457 = vmatpush1.msra.mxu0 0.0
        %458 = vmatprep.subr.mxu0 0.0
        %459 = vmatpush1.msra.mxu0 0.0
        %460 = vmatprep.subr.mxu0 0.0
        %461 = vmatpush1.msra.mxu0 0.0
        %462 = vmatprep.subr.mxu0 0.0
        %463 = vmatpush1.msra.mxu0 0.0
        %464 = vmatprep.subr.mxu0 0.0
        %465 = vmatpush1.msra.mxu0 0.0
        %466 = vmatprep.subr.mxu0 0.0
        %467 = vmatpush1.msra.mxu0 0.0
        %468 = vmatprep.subr.mxu0 0.0
        %469 = vmatpush1.msra.mxu0 0.0
        %470 = vmatprep.subr.mxu0 0.0
        %471 = vmatpush1.msra.mxu0 0.0
        %472 = vmatprep.subr.mxu0 0.0
        %473 = vmatpush1.msra.mxu0 0.0
        %474 = vmatprep.subr.mxu0 0.0
        %475 = vmatpush1.msra.mxu0 0.0
        %476 = vmatprep.subr.mxu0 0.0
        %477 = vmatpush1.msra.mxu0 0.0
        %478 = vmatprep.subr.mxu0 0.0
        %479 = vmatpush1.msra.mxu0 0.0
        %480 = vmatprep.subr.mxu0 0.0
        %481 = vmatpush1.msra.mxu0 0.0
        %482 = vmatprep.subr.mxu0 0.0
        %483 = vmatpush1.msra.mxu0 0.0
        %484 = vmatprep.subr.mxu0 0.0
        %485 = vmatpush1.msra.mxu0 0.0
        %486 = vmatprep.mubr.f32.mxu0 0.0
        %487 = vmatmul.mubr.f32.gmra.mrb[0].mxu0 %v420
        %v488 = vpop.f32.mrb[0].mxu0
        %v489 = vadd.f32 %v416, %v488
        %v490 = vpop.f32.mrb[0].mxu0
        %491 = vdwg.mxu0
        %v492 = vld [vmem:[#allocation7] sm:$0xff]
        %v493 = vld [vmem:[#allocation7 + $0x8] sm:$0xff]
        %v494 = vld [vmem:[#allocation7 + $0x10] sm:$0xff]
        %v495 = vld [vmem:[#allocation7 + $0x18] sm:$0xff]
        %v496 = vld [vmem:[%s5] sm:$0x1]
        %v498 = vlaneseq
        %v499 = vshrl.u32 %v498, 7
        %v500 = vsub.s32 0, %v499
        %v501 = vrot.slane %v496, %v500
        %503 = vmatprep.subr.mxu0 0.0
        %504 = vmatpush1.msra.mxu0 %v492
        %505 = vmatprep.subr.mxu0 0.0
        %506 = vmatpush1.msra.mxu0 %v493
        %507 = vmatprep.subr.mxu0 0.0
        %508 = vmatpush1.msra.mxu0 %v494
        %509 = vmatprep.subr.mxu0 0.0
        %510 = vmatpush1.msra.mxu0 %v495
        %511 = vmatprep.subr.mxu0 0.0
        %512 = vmatpush1.msra.mxu0 0.0
        %513 = vmatprep.subr.mxu0 0.0
        %514 = vmatpush1.msra.mxu0 0.0
        %515 = vmatprep.subr.mxu0 0.0
        %516 = vmatpush1.msra.mxu0 0.0
        %517 = vmatprep.subr.mxu0 0.0
        %518 = vmatpush1.msra.mxu0 0.0
        %519 = vmatprep.subr.mxu0 0.0
        %520 = vmatpush1.msra.mxu0 0.0
        %521 = vmatprep.subr.mxu0 0.0
        %522 = vmatpush1.msra.mxu0 0.0
        %523 = vmatprep.subr.mxu0 0.0
        %524 = vmatpush1.msra.mxu0 0.0
        %525 = vmatprep.subr.mxu0 0.0
        %526 = vmatpush1.msra.mxu0 0.0
        %527 = vmatprep.subr.mxu0 0.0
        %528 = vmatpush1.msra.mxu0 0.0
        %529 = vmatprep.subr.mxu0 0.0
        %530 = vmatpush1.msra.mxu0 0.0
        %531 = vmatprep.subr.mxu0 0.0
        %532 = vmatpush1.msra.mxu0 0.0
        %533 = vmatprep.subr.mxu0 0.0
        %534 = vmatpush1.msra.mxu0 0.0
        %535 = vmatprep.subr.mxu0 0.0
        %536 = vmatpush1.msra.mxu0 0.0
        %537 = vmatprep.subr.mxu0 0.0
        %538 = vmatpush1.msra.mxu0 0.0
        %539 = vmatprep.subr.mxu0 0.0
        %540 = vmatpush1.msra.mxu0 0.0
        %541 = vmatprep.subr.mxu0 0.0
        %542 = vmatpush1.msra.mxu0 0.0
        %543 = vmatprep.subr.mxu0 0.0
        %544 = vmatpush1.msra.mxu0 0.0
        %545 = vmatprep.subr.mxu0 0.0
        %546 = vmatpush1.msra.mxu0 0.0
        %547 = vmatprep.subr.mxu0 0.0
        %548 = vmatpush1.msra.mxu0 0.0
        %549 = vmatprep.subr.mxu0 0.0
        %550 = vmatpush1.msra.mxu0 0.0
        %551 = vmatprep.subr.mxu0 0.0
        %552 = vmatpush1.msra.mxu0 0.0
        %553 = vmatprep.subr.mxu0 0.0
        %554 = vmatpush1.msra.mxu0 0.0
        %555 = vmatprep.subr.mxu0 0.0
        %556 = vmatpush1.msra.mxu0 0.0
        %557 = vmatprep.subr.mxu0 0.0
        %558 = vmatpush1.msra.mxu0 0.0
        %559 = vmatprep.subr.mxu0 0.0
        %560 = vmatpush1.msra.mxu0 0.0
        %561 = vmatprep.subr.mxu0 0.0
        %562 = vmatpush1.msra.mxu0 0.0
        %563 = vmatprep.subr.mxu0 0.0
        %564 = vmatpush1.msra.mxu0 0.0
        %565 = vmatprep.subr.mxu0 0.0
        %566 = vmatpush1.msra.mxu0 0.0
        %567 = vmatprep.mubr.f32.mxu0 0.0
        %568 = vmatmul.mubr.f32.gmra.mrb[0].mxu0 %v420
        %v569 = vpop.f32.mrb[0].mxu0
        %v570 = vadd.f32 %v501, %v569
        %v571 = vpop.f32.mrb[0].mxu0
        %572 = vdwg.mxu0
        %v573 = vld [vmem:[#allocation8] sm:$0xff]
        %v574 = vld [vmem:[#allocation8 + $0x8] sm:$0xff]
        %v575 = vld [vmem:[#allocation8 + $0x10] sm:$0xff]
        %v576 = vld [vmem:[#allocation8 + $0x18] sm:$0xff]
        %v577 = vld [vmem:[%s6] sm:$0x1]
        %v579 = vlaneseq
        %v580 = vshrl.u32 %v579, 7
        %v581 = vsub.s32 0, %v580
        %v582 = vrot.slane %v577, %v581
        %584 = vmatprep.subr.mxu0 0.0
        %585 = vmatpush1.msra.mxu0 %v573
        %586 = vmatprep.subr.mxu0 0.0
        %587 = vmatpush1.msra.mxu0 %v574
        %588 = vmatprep.subr.mxu0 0.0
        %589 = vmatpush1.msra.mxu0 %v575
        %590 = vmatprep.subr.mxu0 0.0
        %591 = vmatpush1.msra.mxu0 %v576
        %592 = vmatprep.subr.mxu0 0.0
        %593 = vmatpush1.msra.mxu0 0.0
        %594 = vmatprep.subr.mxu0 0.0
        %595 = vmatpush1.msra.mxu0 0.0
        %596 = vmatprep.subr.mxu0 0.0
        %597 = vmatpush1.msra.mxu0 0.0
        %598 = vmatprep.subr.mxu0 0.0
        %599 = vmatpush1.msra.mxu0 0.0
        %600 = vmatprep.subr.mxu0 0.0
        %601 = vmatpush1.msra.mxu0 0.0
        %602 = vmatprep.subr.mxu0 0.0
        %603 = vmatpush1.msra.mxu0 0.0
        %604 = vmatprep.subr.mxu0 0.0
        %605 = vmatpush1.msra.mxu0 0.0
        %606 = vmatprep.subr.mxu0 0.0
        %607 = vmatpush1.msra.mxu0 0.0
        %608 = vmatprep.subr.mxu0 0.0
        %609 = vmatpush1.msra.mxu0 0.0
        %610 = vmatprep.subr.mxu0 0.0
        %611 = vmatpush1.msra.mxu0 0.0
        %612 = vmatprep.subr.mxu0 0.0
        %613 = vmatpush1.msra.mxu0 0.0
        %614 = vmatprep.subr.mxu0 0.0
        %615 = vmatpush1.msra.mxu0 0.0
        %616 = vmatprep.subr.mxu0 0.0
        %617 = vmatpush1.msra.mxu0 0.0
        %618 = vmatprep.subr.mxu0 0.0
        %619 = vmatpush1.msra.mxu0 0.0
        %620 = vmatprep.subr.mxu0 0.0
        %621 = vmatpush1.msra.mxu0 0.0
        %622 = vmatprep.subr.mxu0 0.0
        %623 = vmatpush1.msra.mxu0 0.0
        %624 = vmatprep.subr.mxu0 0.0
        %625 = vmatpush1.msra.mxu0 0.0
        %626 = vmatprep.subr.mxu0 0.0
        %627 = vmatpush1.msra.mxu0 0.0
        %628 = vmatprep.subr.mxu0 0.0
        %629 = vmatpush1.msra.mxu0 0.0
        %630 = vmatprep.subr.mxu0 0.0
        %631 = vmatpush1.msra.mxu0 0.0
        %632 = vmatprep.subr.mxu0 0.0
        %633 = vmatpush1.msra.mxu0 0.0
        %634 = vmatprep.subr.mxu0 0.0
        %635 = vmatpush1.msra.mxu0 0.0
        %636 = vmatprep.subr.mxu0 0.0
        %637 = vmatpush1.msra.mxu0 0.0
        %638 = vmatprep.subr.mxu0 0.0
        %639 = vmatpush1.msra.mxu0 0.0
        %640 = vmatprep.subr.mxu0 0.0
        %641 = vmatpush1.msra.mxu0 0.0
        %642 = vmatprep.subr.mxu0 0.0
        %643 = vmatpush1.msra.mxu0 0.0
        %644 = vmatprep.subr.mxu0 0.0
        %645 = vmatpush1.msra.mxu0 0.0
        %646 = vmatprep.subr.mxu0 0.0
        %647 = vmatpush1.msra.mxu0 0.0
        %648 = vmatprep.mubr.f32.mxu0 0.0
        %649 = vmatmul.mubr.f32.gmra.mrb[0].mxu0 %v420
        %v650 = vpop.f32.mrb[0].mxu0
        %v651 = vadd.f32 %v582, %v650
        %v652 = vpop.f32.mrb[0].mxu0
        %653 = vdwg.mxu0
        %v654 = vmul.f32 %v489, 0.35355338
        %v655 = vlaneseq
        %v656 = vshrl.u32 %v655, 7
        %v657 = vlaneseq
        %v658 = vand.u32 %v657, 127
        %vm659 = vcmp.le.s32.totalorder %v658, %v656
        %v660 = vsel %vm659, 0.0, -1e+30
        %vm661 = vcmask 64512
        %v663 = vsel %vm661, %v654, 0
        %v666 = vsel %vm661, %v570, 0
        %668 = vmatprep.subr.mxu0 0.0
        %669 = vmatpush1.xpose.msra.mxu0 %v666
        %670 = vmatprep.subr.mxu0 0.0
        %671 = vmatpush1.xpose.msra.mxu0 0.0
        %672 = vmatprep.subr.mxu0 0.0
        %673 = vmatpush1.xpose.msra.mxu0 0.0
        %674 = vmatprep.subr.mxu0 0.0
        %675 = vmatpush1.xpose.msra.mxu0 0.0
        %676 = vmatprep.subr.mxu0 0.0
        %677 = vmatpush1.xpose.msra.mxu0 0.0
        %678 = vmatprep.subr.mxu0 0.0
        %679 = vmatpush1.xpose.msra.mxu0 0.0
        %680 = vmatprep.subr.mxu0 0.0
        %681 = vmatpush1.xpose.msra.mxu0 0.0
        %682 = vmatprep.subr.mxu0 0.0
        %683 = vmatpush1.xpose.msra.mxu0 0.0
        %684 = vmatprep.subr.mxu0 0.0
        %685 = vmatpush1.xpose.msra.mxu0 0.0
        %686 = vmatprep.subr.mxu0 0.0
        %687 = vmatpush1.xpose.msra.mxu0 0.0
        %688 = vmatprep.subr.mxu0 0.0
        %689 = vmatpush1.xpose.msra.mxu0 0.0
        %690 = vmatprep.subr.mxu0 0.0
        %691 = vmatpush1.xpose.msra.mxu0 0.0
        %692 = vmatprep.subr.mxu0 0.0
        %693 = vmatpush1.xpose.msra.mxu0 0.0
        %694 = vmatprep.subr.mxu0 0.0
        %695 = vmatpush1.xpose.msra.mxu0 0.0
        %696 = vmatprep.subr.mxu0 0.0
        %697 = vmatpush1.xpose.msra.mxu0 0.0
        %698 = vmatprep.subr.mxu0 0.0
        %699 = vmatpush1.xpose.msra.mxu0 0.0
        %700 = vmatprep.subr.mxu0 0.0
        %701 = vmatpush1.xpose.msra.mxu0 0.0
        %702 = vmatprep.subr.mxu0 0.0
        %703 = vmatpush1.xpose.msra.mxu0 0.0
        %704 = vmatprep.subr.mxu0 0.0
        %705 = vmatpush1.xpose.msra.mxu0 0.0
        %706 = vmatprep.subr.mxu0 0.0
        %707 = vmatpush1.xpose.msra.mxu0 0.0
        %708 = vmatprep.subr.mxu0 0.0
        %709 = vmatpush1.xpose.msra.mxu0 0.0
        %710 = vmatprep.subr.mxu0 0.0
        %711 = vmatpush1.xpose.msra.mxu0 0.0
        %712 = vmatprep.subr.mxu0 0.0
        %713 = vmatpush1.xpose.msra.mxu0 0.0
        %714 = vmatprep.subr.mxu0 0.0
        %715 = vmatpush1.xpose.msra.mxu0 0.0
        %716 = vmatprep.subr.mxu0 0.0
        %717 = vmatpush1.xpose.msra.mxu0 0.0
        %718 = vmatprep.subr.mxu0 0.0
        %719 = vmatpush1.xpose.msra.mxu0 0.0
        %720 = vmatprep.subr.mxu0 0.0
        %721 = vmatpush1.xpose.msra.mxu0 0.0
        %722 = vmatprep.subr.mxu0 0.0
        %723 = vmatpush1.xpose.msra.mxu0 0.0
        %724 = vmatprep.subr.mxu0 0.0
        %725 = vmatpush1.xpose.msra.mxu0 0.0
        %726 = vmatprep.subr.mxu0 0.0
        %727 = vmatpush1.xpose.msra.mxu0 0.0
        %728 = vmatprep.subr.mxu0 0.0
        %729 = vmatpush1.xpose.msra.mxu0 0.0
        %730 = vmatprep.subr.mxu0 0.0
        %731 = vmatpush1.xpose.msra.mxu0 0.0
        %732 = vmatprep.mubr.f32.mxu0 0.0
        %733 = vmatmul.mubr.f32.gmra.mrb[0].mxu0 %v663
        %v734 = vpop.f32.mrb[0].mxu0
        %v735 = vadd.f32 %v660, %v734
        %v736 = vpop.f32.mrb[0].mxu0
        %737 = vdwg.mxu0
        %v738 = vsel %vm661, %v735, -inf
        %739 = vmax.xlane.f32.xlu0 %v738
        %v740 = vpop.xlane.xlu0 %739
        %v741 = vsub.f32 %v735, %v740
        %v742 = vmul.f32 %v741, 1.442695
        %v743 = vpow.pop %v742
        %v744 = vsel %vm661, %v743, 0.0
        %745 = vadd.xlane.f32.xlu0 %v744
        %v746 = vpop.xlane.xlu0 %745
        %v747 = vrcp.pop %v746
        %v748 = vmul.f32 %v743, %v747
        %v750 = vsel %vm661, %v748, 0
        %752 = vmatprep.subr.mxu0 0.0
        %753 = vmatpush1.msra.mxu0 %v651
        %754 = vmatprep.subr.mxu0 0.0
        %755 = vmatpush1.msra.mxu0 0.0
        %756 = vmatprep.subr.mxu0 0.0
        %757 = vmatpush1.msra.mxu0 0.0
        %758 = vmatprep.subr.mxu0 0.0
        %759 = vmatpush1.msra.mxu0 0.0
        %760 = vmatprep.subr.mxu0 0.0
        %761 = vmatpush1.msra.mxu0 0.0
        %762 = vmatprep.subr.mxu0 0.0
        %763 = vmatpush1.msra.mxu0 0.0
        %764 = vmatprep.subr.mxu0 0.0
        %765 = vmatpush1.msra.mxu0 0.0
        %766 = vmatprep.subr.mxu0 0.0
        %767 = vmatpush1.msra.mxu0 0.0
        %768 = vmatprep.subr.mxu0 0.0
        %769 = vmatpush1.msra.mxu0 0.0
        %770 = vmatprep.subr.mxu0 0.0
        %771 = vmatpush1.msra.mxu0 0.0
        %772 = vmatprep.subr.mxu0 0.0
        %773 = vmatpush1.msra.mxu0 0.0
        %774 = vmatprep.subr.mxu0 0.0
        %775 = vmatpush1.msra.mxu0 0.0
        %776 = vmatprep.subr.mxu0 0.0
        %777 = vmatpush1.msra.mxu0 0.0
        %778 = vmatprep.subr.mxu0 0.0
        %779 = vmatpush1.msra.mxu0 0.0
        %780 = vmatprep.subr.mxu0 0.0
        %781 = vmatpush1.msra.mxu0 0.0
        %782 = vmatprep.subr.mxu0 0.0
        %783 = vmatpush1.msra.mxu0 0.0
        %784 = vmatprep.subr.mxu0 0.0
        %785 = vmatpush1.msra.mxu0 0.0
        %786 = vmatprep.subr.mxu0 0.0
        %787 = vmatpush1.msra.mxu0 0.0
        %788 = vmatprep.subr.mxu0 0.0
        %789 = vmatpush1.msra.mxu0 0.0
        %790 = vmatprep.subr.mxu0 0.0
        %791 = vmatpush1.msra.mxu0 0.0
        %792 = vmatprep.subr.mxu0 0.0
        %793 = vmatpush1.msra.mxu0 0.0
        %794 = vmatprep.subr.mxu0 0.0
        %795 = vmatpush1.msra.mxu0 0.0
        %796 = vmatprep.subr.mxu0 0.0
        %797 = vmatpush1.msra.mxu0 0.0
        %798 = vmatprep.subr.mxu0 0.0
        %799 = vmatpush1.msra.mxu0 0.0
        %800 = vmatprep.subr.mxu0 0.0
        %801 = vmatpush1.msra.mxu0 0.0
        %802 = vmatprep.subr.mxu0 0.0
        %803 = vmatpush1.msra.mxu0 0.0
        %804 = vmatprep.subr.mxu0 0.0
        %805 = vmatpush1.msra.mxu0 0.0
        %806 = vmatprep.subr.mxu0 0.0
        %807 = vmatpush1.msra.mxu0 0.0
        %808 = vmatprep.subr.mxu0 0.0
        %809 = vmatpush1.msra.mxu0 0.0
        %810 = vmatprep.subr.mxu0 0.0
        %811 = vmatpush1.msra.mxu0 0.0
        %812 = vmatprep.subr.mxu0 0.0
        %813 = vmatpush1.msra.mxu0 0.0
        %814 = vmatprep.subr.mxu0 0.0
        %815 = vmatpush1.msra.mxu0 0.0
        %816 = vmatprep.mubr.f32.mxu0 0.0
        %817 = vmatmul.mubr.f32.gmra.mrb[0].mxu0 %v750
        %v818 = vpop.f32.mrb[0].mxu0
        %v819 = vadd.f32 0.0, %v818
        %v820 = vpop.f32.mrb[0].mxu0
        %821 = vdwg.mxu0
        %v822 = vld [vmem:[#allocation10] sm:$0xff]
        %823 = vrot.lane.b32.xlu0 %v654, 120
        %v824 = vpop.permute.xlu0 %823
        %825 = vrot.lane.b32.xlu0 %v570, 120
        %v826 = vpop.permute.xlu0 %825
        %v827 = vsel %vm661, %v824, 0
        %v829 = vsel %vm661, %v826, 0
        %831 = vmatprep.subr.mxu0 0.0
        %832 = vmatpush1.xpose.msra.mxu0 %v829
        %833 = vmatprep.subr.mxu0 0.0
        %834 = vmatpush1.xpose.msra.mxu0 0.0
        %835 = vmatprep.subr.mxu0 0.0
        %836 = vmatpush1.xpose.msra.mxu0 0.0
        %837 = vmatprep.subr.mxu0 0.0
        %838 = vmatpush1.xpose.msra.mxu0 0.0
        %839 = vmatprep.subr.mxu0 0.0
        %840 = vmatpush1.xpose.msra.mxu0 0.0
        %841 = vmatprep.subr.mxu0 0.0
        %842 = vmatpush1.xpose.msra.mxu0 0.0
        %843 = vmatprep.subr.mxu0 0.0
        %844 = vmatpush1.xpose.msra.mxu0 0.0
        %845 = vmatprep.subr.mxu0 0.0
        %846 = vmatpush1.xpose.msra.mxu0 0.0
        %847 = vmatprep.subr.mxu0 0.0
        %848 = vmatpush1.xpose.msra.mxu0 0.0
        %849 = vmatprep.subr.mxu0 0.0
        %850 = vmatpush1.xpose.msra.mxu0 0.0
        %851 = vmatprep.subr.mxu0 0.0
        %852 = vmatpush1.xpose.msra.mxu0 0.0
        %853 = vmatprep.subr.mxu0 0.0
        %854 = vmatpush1.xpose.msra.mxu0 0.0
        %855 = vmatprep.subr.mxu0 0.0
        %856 = vmatpush1.xpose.msra.mxu0 0.0
        %857 = vmatprep.subr.mxu0 0.0
        %858 = vmatpush1.xpose.msra.mxu0 0.0
        %859 = vmatprep.subr.mxu0 0.0
        %860 = vmatpush1.xpose.msra.mxu0 0.0
        %861 = vmatprep.subr.mxu0 0.0
        %862 = vmatpush1.xpose.msra.mxu0 0.0
        %863 = vmatprep.subr.mxu0 0.0
        %864 = vmatpush1.xpose.msra.mxu0 0.0
        %865 = vmatprep.subr.mxu0 0.0
        %866 = vmatpush1.xpose.msra.mxu0 0.0
        %867 = vmatprep.subr.mxu0 0.0
        %868 = vmatpush1.xpose.msra.mxu0 0.0
        %869 = vmatprep.subr.mxu0 0.0
        %870 = vmatpush1.xpose.msra.mxu0 0.0
        %871 = vmatprep.subr.mxu0 0.0
        %872 = vmatpush1.xpose.msra.mxu0 0.0
        %873 = vmatprep.subr.mxu0 0.0
        %874 = vmatpush1.xpose.msra.mxu0 0.0
        %875 = vmatprep.subr.mxu0 0.0
        %876 = vmatpush1.xpose.msra.mxu0 0.0
        %877 = vmatprep.subr.mxu0 0.0
        %878 = vmatpush1.xpose.msra.mxu0 0.0
        %879 = vmatprep.subr.mxu0 0.0
        %880 = vmatpush1.xpose.msra.mxu0 0.0
        %881 = vmatprep.subr.mxu0 0.0
        %882 = vmatpush1.xpose.msra.mxu0 0.0
        %883 = vmatprep.subr.mxu0 0.0
        %884 = vmatpush1.xpose.msra.mxu0 0.0
        %885 = vmatprep.subr.mxu0 0.0
        %886 = vmatpush1.xpose.msra.mxu0 0.0
        %887 = vmatprep.subr.mxu0 0.0
        %888 = vmatpush1.xpose.msra.mxu0 0.0
        %889 = vmatprep.subr.mxu0 0.0
        %890 = vmatpush1.xpose.msra.mxu0 0.0
        %891 = vmatprep.subr.mxu0 0.0
        %892 = vmatpush1.xpose.msra.mxu0 0.0
        %893 = vmatprep.subr.mxu0 0.0
        %894 = vmatpush1.xpose.msra.mxu0 0.0
        %895 = vmatprep.mubr.f32.mxu0 0.0
        %896 = vmatmul.mubr.f32.gmra.mrb[0].mxu0 %v827
        %v897 = vpop.f32.mrb[0].mxu0
        %v898 = vadd.f32 %v660, %v897
        %v899 = vpop.f32.mrb[0].mxu0
        %900 = vdwg.mxu0
        %v901 = vsel %vm661, %v898, -inf
        %902 = vmax.xlane.f32.xlu0 %v901
        %v903 = vpop.xlane.xlu0 %902
        %v904 = vsub.f32 %v898, %v903
        %v905 = vmul.f32 %v904, 1.442695
        %v906 = vpow.pop %v905
        %v907 = vsel %vm661, %v906, 0.0
        %908 = vadd.xlane.f32.xlu0 %v907
        %v909 = vpop.xlane.xlu0 %908
        %v910 = vrcp.pop %v909
        %v911 = vmul.f32 %v906, %v910
        %913 = vrot.lane.b32.xlu0 %v651, 120
        %v914 = vpop.permute.xlu0 %913
        %v917 = vsel %vm661, %v911, 0
        %919 = vmatprep.subr.mxu0 0.0
        %920 = vmatpush1.msra.mxu0 %v914
        %921 = vmatprep.subr.mxu0 0.0
        %922 = vmatpush1.msra.mxu0 0.0
        %923 = vmatprep.subr.mxu0 0.0
        %924 = vmatpush1.msra.mxu0 0.0
        %925 = vmatprep.subr.mxu0 0.0
        %926 = vmatpush1.msra.mxu0 0.0
        %927 = vmatprep.subr.mxu0 0.0
        %928 = vmatpush1.msra.mxu0 0.0
        %929 = vmatprep.subr.mxu0 0.0
        %930 = vmatpush1.msra.mxu0 0.0
        %931 = vmatprep.subr.mxu0 0.0
        %932 = vmatpush1.msra.mxu0 0.0
        %933 = vmatprep.subr.mxu0 0.0
        %934 = vmatpush1.msra.mxu0 0.0
        %935 = vmatprep.subr.mxu0 0.0
        %936 = vmatpush1.msra.mxu0 0.0
        %937 = vmatprep.subr.mxu0 0.0
        %938 = vmatpush1.msra.mxu0 0.0
        %939 = vmatprep.subr.mxu0 0.0
        %940 = vmatpush1.msra.mxu0 0.0
        %941 = vmatprep.subr.mxu0 0.0
        %942 = vmatpush1.msra.mxu0 0.0
        %943 = vmatprep.subr.mxu0 0.0
        %944 = vmatpush1.msra.mxu0 0.0
        %945 = vmatprep.subr.mxu0 0.0
        %946 = vmatpush1.msra.mxu0 0.0
        %947 = vmatprep.subr.mxu0 0.0
        %948 = vmatpush1.msra.mxu0 0.0
        %949 = vmatprep.subr.mxu0 0.0
        %950 = vmatpush1.msra.mxu0 0.0
        %951 = vmatprep.subr.mxu0 0.0
        %952 = vmatpush1.msra.mxu0 0.0
        %953 = vmatprep.subr.mxu0 0.0
        %954 = vmatpush1.msra.mxu0 0.0
        %955 = vmatprep.subr.mxu0 0.0
        %956 = vmatpush1.msra.mxu0 0.0
        %957 = vmatprep.subr.mxu0 0.0
        %958 = vmatpush1.msra.mxu0 0.0
        %959 = vmatprep.subr.mxu0 0.0
        %960 = vmatpush1.msra.mxu0 0.0
        %961 = vmatprep.subr.mxu0 0.0
        %962 = vmatpush1.msra.mxu0 0.0
        %963 = vmatprep.subr.mxu0 0.0
        %964 = vmatpush1.msra.mxu0 0.0
        %965 = vmatprep.subr.mxu0 0.0
        %966 = vmatpush1.msra.mxu0 0.0
        %967 = vmatprep.subr.mxu0 0.0
        %968 = vmatpush1.msra.mxu0 0.0
        %969 = vmatprep.subr.mxu0 0.0
        %970 = vmatpush1.msra.mxu0 0.0
        %971 = vmatprep.subr.mxu0 0.0
        %972 = vmatpush1.msra.mxu0 0.0
        %973 = vmatprep.subr.mxu0 0.0
        %974 = vmatpush1.msra.mxu0 0.0
        %975 = vmatprep.subr.mxu0 0.0
        %976 = vmatpush1.msra.mxu0 0.0
        %977 = vmatprep.subr.mxu0 0.0
        %978 = vmatpush1.msra.mxu0 0.0
        %979 = vmatprep.subr.mxu0 0.0
        %980 = vmatpush1.msra.mxu0 0.0
        %981 = vmatprep.subr.mxu0 0.0
        %982 = vmatpush1.msra.mxu0 0.0
        %983 = vmatprep.mubr.f32.mxu0 0.0
        %984 = vmatmul.mubr.f32.gmra.mrb[0].mxu0 %v917
        %v985 = vpop.f32.mrb[0].mxu0
        %v986 = vadd.f32 0.0, %v985
        %v987 = vpop.f32.mrb[0].mxu0
        %988 = vdwg.mxu0
        %v989 = vld [vmem:[#allocation10 + $0x8] sm:$0xff]
        %v991 = vsel %vm661, %v986, 0
        %993 = vmatprep.subr.mxu0 0.0
        %994 = vmatpush1.msra.mxu0 %v989
        %995 = vmatprep.subr.mxu0 0.0
        %996 = vmatpush1.msra.mxu0 0.0
        %997 = vmatprep.subr.mxu0 0.0
        %998 = vmatpush1.msra.mxu0 0.0
        %999 = vmatprep.subr.mxu0 0.0
        %1000 = vmatpush1.msra.mxu0 0.0
        %1001 = vmatprep.subr.mxu0 0.0
        %1002 = vmatpush1.msra.mxu0 0.0
        %1003 = vmatprep.subr.mxu0 0.0
        %1004 = vmatpush1.msra.mxu0 0.0
        %1005 = vmatprep.subr.mxu0 0.0
        %1006 = vmatpush1.msra.mxu0 0.0
        %1007 = vmatprep.subr.mxu0 0.0
        %1008 = vmatpush1.msra.mxu0 0.0
        %1009 = vmatprep.subr.mxu0 0.0
        %1010 = vmatpush1.msra.mxu0 0.0
        %1011 = vmatprep.subr.mxu0 0.0
        %1012 = vmatpush1.msra.mxu0 0.0
        %1013 = vmatprep.subr.mxu0 0.0
        %1014 = vmatpush1.msra.mxu0 0.0
        %1015 = vmatprep.subr.mxu0 0.0
        %1016 = vmatpush1.msra.mxu0 0.0
        %1017 = vmatprep.subr.mxu0 0.0
        %1018 = vmatpush1.msra.mxu0 0.0
        %1019 = vmatprep.subr.mxu0 0.0
        %1020 = vmatpush1.msra.mxu0 0.0
        %1021 = vmatprep.subr.mxu0 0.0
        %1022 = vmatpush1.msra.mxu0 0.0
        %1023 = vmatprep.subr.mxu0 0.0
        %1024 = vmatpush1.msra.mxu0 0.0
        %1025 = vmatprep.subr.mxu0 0.0
        %1026 = vmatpush1.msra.mxu0 0.0
        %1027 = vmatprep.subr.mxu0 0.0
        %1028 = vmatpush1.msra.mxu0 0.0
        %1029 = vmatprep.subr.mxu0 0.0
        %1030 = vmatpush1.msra.mxu0 0.0
        %1031 = vmatprep.subr.mxu0 0.0
        %1032 = vmatpush1.msra.mxu0 0.0
        %1033 = vmatprep.subr.mxu0 0.0
        %1034 = vmatpush1.msra.mxu0 0.0
        %1035 = vmatprep.subr.mxu0 0.0
        %1036 = vmatpush1.msra.mxu0 0.0
        %1037 = vmatprep.subr.mxu0 0.0
        %1038 = vmatpush1.msra.mxu0 0.0
        %1039 = vmatprep.subr.mxu0 0.0
        %1040 = vmatpush1.msra.mxu0 0.0
        %1041 = vmatprep.subr.mxu0 0.0
        %1042 = vmatpush1.msra.mxu0 0.0
        %1043 = vmatprep.subr.mxu0 0.0
        %1044 = vmatpush1.msra.mxu0 0.0
        %1045 = vmatprep.subr.mxu0 0.0
        %1046 = vmatpush1.msra.mxu0 0.0
        %1047 = vmatprep.subr.mxu0 0.0
        %1048 = vmatpush1.msra.mxu0 0.0
        %1049 = vmatprep.subr.mxu0 0.0
        %1050 = vmatpush1.msra.mxu0 0.0
        %1051 = vmatprep.subr.mxu0 0.0
        %1052 = vmatpush1.msra.mxu0 0.0
        %1053 = vmatprep.subr.mxu0 0.0
        %1054 = vmatpush1.msra.mxu0 0.0
        %1055 = vmatprep.subr.mxu0 0.0
        %1056 = vmatpush1.msra.mxu0 0.0
        %1057 = vmatprep.mubr.f32.mxu0 0.0
        %1058 = vmatmul.mubr.f32.gmra.mrb[0].mxu0 %v991
        %v1059 = vpop.f32.mrb[0].mxu0
        %v1060 = vadd.f32 0.0, %v1059
        %v1061 = vpop.f32.mrb[0].mxu0
        %1062 = vdwg.mxu0
        %v1064 = vsel %vm661, %v819, 0
        %1066 = vmatprep.subr.mxu0 0.0
        %1067 = vmatpush1.msra.mxu0 %v822
        %1068 = vmatprep.subr.mxu0 0.0
        %1069 = vmatpush1.msra.mxu0 0.0
        %1070 = vmatprep.subr.mxu0 0.0
        %1071 = vmatpush1.msra.mxu0 0.0
        %1072 = vmatprep.subr.mxu0 0.0
        %1073 = vmatpush1.msra.mxu0 0.0
        %1074 = vmatprep.subr.mxu0 0.0
        %1075 = vmatpush1.msra.mxu0 0.0
        %1076 = vmatprep.subr.mxu0 0.0
        %1077 = vmatpush1.msra.mxu0 0.0
        %1078 = vmatprep.subr.mxu0 0.0
        %1079 = vmatpush1.msra.mxu0 0.0
        %1080 = vmatprep.subr.mxu0 0.0
        %1081 = vmatpush1.msra.mxu0 0.0
        %1082 = vmatprep.subr.mxu0 0.0
        %1083 = vmatpush1.msra.mxu0 0.0
        %1084 = vmatprep.subr.mxu0 0.0
        %1085 = vmatpush1.msra.mxu0 0.0
        %1086 = vmatprep.subr.mxu0 0.0
        %1087 = vmatpush1.msra.mxu0 0.0
        %1088 = vmatprep.subr.mxu0 0.0
        %1089 = vmatpush1.msra.mxu0 0.0
        %1090 = vmatprep.subr.mxu0 0.0
        %1091 = vmatpush1.msra.mxu0 0.0
        %1092 = vmatprep.subr.mxu0 0.0
        %1093 = vmatpush1.msra.mxu0 0.0
        %1094 = vmatprep.subr.mxu0 0.0
        %1095 = vmatpush1.msra.mxu0 0.0
        %1096 = vmatprep.subr.mxu0 0.0
        %1097 = vmatpush1.msra.mxu0 0.0
        %1098 = vmatprep.subr.mxu0 0.0
        %1099 = vmatpush1.msra.mxu0 0.0
        %1100 = vmatprep.subr.mxu0 0.0
        %1101 = vmatpush1.msra.mxu0 0.0
        %1102 = vmatprep.subr.mxu0 0.0
        %1103 = vmatpush1.msra.mxu0 0.0
        %1104 = vmatprep.subr.mxu0 0.0
        %1105 = vmatpush1.msra.mxu0 0.0
        %1106 = vmatprep.subr.mxu0 0.0
        %1107 = vmatpush1.msra.mxu0 0.0
        %1108 = vmatprep.subr.mxu0 0.0
        %1109 = vmatpush1.msra.mxu0 0.0
        %1110 = vmatprep.subr.mxu0 0.0
        %1111 = vmatpush1.msra.mxu0 0.0
        %1112 = vmatprep.subr.mxu0 0.0
        %1113 = vmatpush1.msra.mxu0 0.0
        %1114 = vmatprep.subr.mxu0 0.0
        %1115 = vmatpush1.msra.mxu0 0.0
        %1116 = vmatprep.subr.mxu0 0.0
        %1117 = vmatpush1.msra.mxu0 0.0
        %1118 = vmatprep.subr.mxu0 0.0
        %1119 = vmatpush1.msra.mxu0 0.0
        %1120 = vmatprep.subr.mxu0 0.0
        %1121 = vmatpush1.msra.mxu0 0.0
        %1122 = vmatprep.subr.mxu0 0.0
        %1123 = vmatpush1.msra.mxu0 0.0
        %1124 = vmatprep.subr.mxu0 0.0
        %1125 = vmatpush1.msra.mxu0 0.0
        %1126 = vmatprep.subr.mxu0 0.0
        %1127 = vmatpush1.msra.mxu0 0.0
        %1128 = vmatprep.subr.mxu0 0.0
        %1129 = vmatpush1.msra.mxu0 0.0
        %1130 = vmatprep.mubr.f32.mxu0 0.0
        %1131 = vmatmul.mubr.f32.gmra.mrb[0].mxu0 %v1064
        %v1132 = vpop.f32.mrb[0].mxu0
        %v1133 = vadd.f32 %v1060, %v1132
        %v1134 = vpop.f32.mrb[0].mxu0
        %1135 = vdwg.mxu0
        %1136 = vrot.lane.b32.xlu0 %v654, 112
        %v1137 = vpop.permute.xlu0 %1136
        %1138 = vrot.lane.b32.xlu0 %v570, 112
        %v1139 = vpop.permute.xlu0 %1138
        %v1140 = vsel %vm661, %v1137, 0
        %v1142 = vsel %vm661, %v1139, 0
        %1144 = vmatprep.subr.mxu0 0.0
        %1145 = vmatpush1.xpose.msra.mxu0 %v1142
        %1146 = vmatprep.subr.mxu0 0.0
        %1147 = vmatpush1.xpose.msra.mxu0 0.0
        %1148 = vmatprep.subr.mxu0 0.0
        %1149 = vmatpush1.xpose.msra.mxu0 0.0
        %1150 = vmatprep.subr.mxu0 0.0
        %1151 = vmatpush1.xpose.msra.mxu0 0.0
        %1152 = vmatprep.subr.mxu0 0.0
        %1153 = vmatpush1.xpose.msra.mxu0 0.0
        %1154 = vmatprep.subr.mxu0 0.0
        %1155 = vmatpush1.xpose.msra.mxu0 0.0
        %1156 = vmatprep.subr.mxu0 0.0
        %1157 = vmatpush1.xpose.msra.mxu0 0.0
        %1158 = vmatprep.subr.mxu0 0.0
        %1159 = vmatpush1.xpose.msra.mxu0 0.0
        %1160 = vmatprep.subr.mxu0 0.0
        %1161 = vmatpush1.xpose.msra.mxu0 0.0
        %1162 = vmatprep.subr.mxu0 0.0
        %1163 = vmatpush1.xpose.msra.mxu0 0.0
        %1164 = vmatprep.subr.mxu0 0.0
        %1165 = vmatpush1.xpose.msra.mxu0 0.0
        %1166 = vmatprep.subr.mxu0 0.0
        %1167 = vmatpush1.xpose.msra.mxu0 0.0
        %1168 = vmatprep.subr.mxu0 0.0
        %1169 = vmatpush1.xpose.msra.mxu0 0.0
        %1170 = vmatprep.subr.mxu0 0.0
        %1171 = vmatpush1.xpose.msra.mxu0 0.0
        %1172 = vmatprep.subr.mxu0 0.0
        %1173 = vmatpush1.xpose.msra.mxu0 0.0
        %1174 = vmatprep.subr.mxu0 0.0
        %1175 = vmatpush1.xpose.msra.mxu0 0.0
        %1176 = vmatprep.subr.mxu0 0.0
        %1177 = vmatpush1.xpose.msra.mxu0 0.0
        %1178 = vmatprep.subr.mxu0 0.0
        %1179 = vmatpush1.xpose.msra.mxu0 0.0
        %1180 = vmatprep.subr.mxu0 0.0
        %1181 = vmatpush1.xpose.msra.mxu0 0.0
        %1182 = vmatprep.subr.mxu0 0.0
        %1183 = vmatpush1.xpose.msra.mxu0 0.0
        %1184 = vmatprep.subr.mxu0 0.0
        %1185 = vmatpush1.xpose.msra.mxu0 0.0
        %1186 = vmatprep.subr.mxu0 0.0
        %1187 = vmatpush1.xpose.msra.mxu0 0.0
        %1188 = vmatprep.subr.mxu0 0.0
        %1189 = vmatpush1.xpose.msra.mxu0 0.0
        %1190 = vmatprep.subr.mxu0 0.0
        %1191 = vmatpush1.xpose.msra.mxu0 0.0
        %1192 = vmatprep.subr.mxu0 0.0
        %1193 = vmatpush1.xpose.msra.mxu0 0.0
        %1194 = vmatprep.subr.mxu0 0.0
        %1195 = vmatpush1.xpose.msra.mxu0 0.0
        %1196 = vmatprep.subr.mxu0 0.0
        %1197 = vmatpush1.xpose.msra.mxu0 0.0
        %1198 = vmatprep.subr.mxu0 0.0
        %1199 = vmatpush1.xpose.msra.mxu0 0.0
        %1200 = vmatprep.subr.mxu0 0.0
        %1201 = vmatpush1.xpose.msra.mxu0 0.0
        %1202 = vmatprep.subr.mxu0 0.0
        %1203 = vmatpush1.xpose.msra.mxu0 0.0
        %1204 = vmatprep.subr.mxu0 0.0
        %1205 = vmatpush1.xpose.msra.mxu0 0.0
        %1206 = vmatprep.subr.mxu0 0.0
        %1207 = vmatpush1.xpose.msra.mxu0 0.0
        %1208 = vmatprep.mubr.f32.mxu0 0.0
        %1209 = vmatmul.mubr.f32.gmra.mrb[0].mxu0 %v1140
        %v1210 = vpop.f32.mrb[0].mxu0
        %v1211 = vadd.f32 %v660, %v1210
        %v1212 = vpop.f32.mrb[0].mxu0
        %1213 = vdwg.mxu0
        %v1214 = vsel %vm661, %v1211, -inf
        %1215 = vmax.xlane.f32.xlu0 %v1214
        %v1216 = vpop.xlane.xlu0 %1215
        %v1217 = vsub.f32 %v1211, %v1216
        %v1218 = vmul.f32 %v1217, 1.442695
        %v1219 = vpow.pop %v1218
        %v1220 = vsel %vm661, %v1219, 0.0
        %1221 = vadd.xlane.f32.xlu0 %v1220
        %v1222 = vpop.xlane.xlu0 %1221
        %v1223 = vrcp.pop %v1222
        %v1224 = vmul.f32 %v1219, %v1223
        %1225 = vrot.lane.b32.xlu0 %v651, 112
        %v1226 = vpop.permute.xlu0 %1225
        %v1229 = vsel %vm661, %v1224, 0
        %1231 = vmatprep.subr.mxu0 0.0
        %1232 = vmatpush1.msra.mxu0 %v1226
        %1233 = vmatprep.subr.mxu0 0.0
        %1234 = vmatpush1.msra.mxu0 0.0
        %1235 = vmatprep.subr.mxu0 0.0
        %1236 = vmatpush1.msra.mxu0 0.0
        %1237 = vmatprep.subr.mxu0 0.0
        %1238 = vmatpush1.msra.mxu0 0.0
        %1239 = vmatprep.subr.mxu0 0.0
        %1240 = vmatpush1.msra.mxu0 0.0
        %1241 = vmatprep.subr.mxu0 0.0
        %1242 = vmatpush1.msra.mxu0 0.0
        %1243 = vmatprep.subr.mxu0 0.0
        %1244 = vmatpush1.msra.mxu0 0.0
        %1245 = vmatprep.subr.mxu0 0.0
        %1246 = vmatpush1.msra.mxu0 0.0
        %1247 = vmatprep.subr.mxu0 0.0
        %1248 = vmatpush1.msra.mxu0 0.0
        %1249 = vmatprep.subr.mxu0 0.0
        %1250 = vmatpush1.msra.mxu0 0.0
        %1251 = vmatprep.subr.mxu0 0.0
        %1252 = vmatpush1.msra.mxu0 0.0
        %1253 = vmatprep.subr.mxu0 0.0
        %1254 = vmatpush1.msra.mxu0 0.0
        %1255 = vmatprep.subr.mxu0 0.0
        %1256 = vmatpush1.msra.mxu0 0.0
        %1257 = vmatprep.subr.mxu0 0.0
        %1258 = vmatpush1.msra.mxu0 0.0
        %1259 = vmatprep.subr.mxu0 0.0
        %1260 = vmatpush1.msra.mxu0 0.0
        %1261 = vmatprep.subr.mxu0 0.0
        %1262 = vmatpush1.msra.mxu0 0.0
        %1263 = vmatprep.subr.mxu0 0.0
        %1264 = vmatpush1.msra.mxu0 0.0
        %1265 = vmatprep.subr.mxu0 0.0
        %1266 = vmatpush1.msra.mxu0 0.0
        %1267 = vmatprep.subr.mxu0 0.0
        %1268 = vmatpush1.msra.mxu0 0.0
        %1269 = vmatprep.subr.mxu0 0.0
        %1270 = vmatpush1.msra.mxu0 0.0
        %1271 = vmatprep.subr.mxu0 0.0
        %1272 = vmatpush1.msra.mxu0 0.0
        %1273 = vmatprep.subr.mxu0 0.0
        %1274 = vmatpush1.msra.mxu0 0.0
        %1275 = vmatprep.subr.mxu0 0.0
        %1276 = vmatpush1.msra.mxu0 0.0
        %1277 = vmatprep.subr.mxu0 0.0
        %1278 = vmatpush1.msra.mxu0 0.0
        %1279 = vmatprep.subr.mxu0 0.0
        %1280 = vmatpush1.msra.mxu0 0.0
        %1281 = vmatprep.subr.mxu0 0.0
        %1282 = vmatpush1.msra.mxu0 0.0
        %1283 = vmatprep.subr.mxu0 0.0
        %1284 = vmatpush1.msra.mxu0 0.0
        %1285 = vmatprep.subr.mxu0 0.0
        %1286 = vmatpush1.msra.mxu0 0.0
        %1287 = vmatprep.subr.mxu0 0.0
        %1288 = vmatpush1.msra.mxu0 0.0
        %1289 = vmatprep.subr.mxu0 0.0
        %1290 = vmatpush1.msra.mxu0 0.0
        %1291 = vmatprep.subr.mxu0 0.0
        %1292 = vmatpush1.msra.mxu0 0.0
        %1293 = vmatprep.subr.mxu0 0.0
        %1294 = vmatpush1.msra.mxu0 0.0
        %1295 = vmatprep.mubr.f32.mxu0 0.0
        %1296 = vmatmul.mubr.f32.gmra.mrb[0].mxu0 %v1229
        %v1297 = vpop.f32.mrb[0].mxu0
        %v1298 = vadd.f32 0.0, %v1297
        %v1299 = vpop.f32.mrb[0].mxu0
        %1300 = vdwg.mxu0
        %v1301 = vld [vmem:[#allocation10 + $0x10] sm:$0xff]
        %v1303 = vsel %vm661, %v1298, 0
        %1305 = vmatprep.subr.mxu0 0.0
        %1306 = vmatpush1.msra.mxu0 %v1301
        %1307 = vmatprep.subr.mxu0 0.0
        %1308 = vmatpush1.msra.mxu0 0.0
        %1309 = vmatprep.subr.mxu0 0.0
        %1310 = vmatpush1.msra.mxu0 0.0
        %1311 = vmatprep.subr.mxu0 0.0
        %1312 = vmatpush1.msra.mxu0 0.0
        %1313 = vmatprep.subr.mxu0 0.0
        %1314 = vmatpush1.msra.mxu0 0.0
        %1315 = vmatprep.subr.mxu0 0.0
        %1316 = vmatpush1.msra.mxu0 0.0
        %1317 = vmatprep.subr.mxu0 0.0
        %1318 = vmatpush1.msra.mxu0 0.0
        %1319 = vmatprep.subr.mxu0 0.0
        %1320 = vmatpush1.msra.mxu0 0.0
        %1321 = vmatprep.subr.mxu0 0.0
        %1322 = vmatpush1.msra.mxu0 0.0
        %1323 = vmatprep.subr.mxu0 0.0
        %1324 = vmatpush1.msra.mxu0 0.0
        %1325 = vmatprep.subr.mxu0 0.0
        %1326 = vmatpush1.msra.mxu0 0.0
        %1327 = vmatprep.subr.mxu0 0.0
        %1328 = vmatpush1.msra.mxu0 0.0
        %1329 = vmatprep.subr.mxu0 0.0
        %1330 = vmatpush1.msra.mxu0 0.0
        %1331 = vmatprep.subr.mxu0 0.0
        %1332 = vmatpush1.msra.mxu0 0.0
        %1333 = vmatprep.subr.mxu0 0.0
        %1334 = vmatpush1.msra.mxu0 0.0
        %1335 = vmatprep.subr.mxu0 0.0
        %1336 = vmatpush1.msra.mxu0 0.0
        %1337 = vmatprep.subr.mxu0 0.0
        %1338 = vmatpush1.msra.mxu0 0.0
        %1339 = vmatprep.subr.mxu0 0.0
        %1340 = vmatpush1.msra.mxu0 0.0
        %1341 = vmatprep.subr.mxu0 0.0
        %1342 = vmatpush1.msra.mxu0 0.0
        %1343 = vmatprep.subr.mxu0 0.0
        %1344 = vmatpush1.msra.mxu0 0.0
        %1345 = vmatprep.subr.mxu0 0.0
        %1346 = vmatpush1.msra.mxu0 0.0
        %1347 = vmatprep.subr.mxu0 0.0
        %1348 = vmatpush1.msra.mxu0 0.0
        %1349 = vmatprep.subr.mxu0 0.0
        %1350 = vmatpush1.msra.mxu0 0.0
        %1351 = vmatprep.subr.mxu0 0.0
        %1352 = vmatpush1.msra.mxu0 0.0
        %1353 = vmatprep.subr.mxu0 0.0
        %1354 = vmatpush1.msra.mxu0 0.0
        %1355 = vmatprep.subr.mxu0 0.0
        %1356 = vmatpush1.msra.mxu0 0.0
        %1357 = vmatprep.subr.mxu0 0.0
        %1358 = vmatpush1.msra.mxu0 0.0
        %1359 = vmatprep.subr.mxu0 0.0
        %1360 = vmatpush1.msra.mxu0 0.0
        %1361 = vmatprep.subr.mxu0 0.0
        %1362 = vmatpush1.msra.mxu0 0.0
        %1363 = vmatprep.subr.mxu0 0.0
        %1364 = vmatpush1.msra.mxu0 0.0
        %1365 = vmatprep.subr.mxu0 0.0
        %1366 = vmatpush1.msra.mxu0 0.0
        %1367 = vmatprep.subr.mxu0 0.0
        %1368 = vmatpush1.msra.mxu0 0.0
        %1369 = vmatprep.mubr.f32.mxu0 0.0
        %1370 = vmatmul.mubr.f32.gmra.mrb[0].mxu0 %v1303
        %v1371 = vpop.f32.mrb[0].mxu0
        %v1372 = vadd.f32 0.0, %v1371
        %v1373 = vpop.f32.mrb[0].mxu0
        %1374 = vdwg.mxu0
        %v1375 = vadd.f32 %v1133, %v1372
        %1376 = vrot.lane.b32.xlu0 %v654, 104
        %v1377 = vpop.permute.xlu0 %1376
        %1378 = vrot.lane.b32.xlu0 %v570, 104
        %v1379 = vpop.permute.xlu0 %1378
        %v1380 = vsel %vm661, %v1377, 0
        %v1382 = vsel %vm661, %v1379, 0
        %1384 = vmatprep.subr.mxu0 0.0
        %1385 = vmatpush1.xpose.msra.mxu0 %v1382
        %1386 = vmatprep.subr.mxu0 0.0
        %1387 = vmatpush1.xpose.msra.mxu0 0.0
        %1388 = vmatprep.subr.mxu0 0.0
        %1389 = vmatpush1.xpose.msra.mxu0 0.0
        %1390 = vmatprep.subr.mxu0 0.0
        %1391 = vmatpush1.xpose.msra.mxu0 0.0
        %1392 = vmatprep.subr.mxu0 0.0
        %1393 = vmatpush1.xpose.msra.mxu0 0.0
        %1394 = vmatprep.subr.mxu0 0.0
        %1395 = vmatpush1.xpose.msra.mxu0 0.0
        %1396 = vmatprep.subr.mxu0 0.0
        %1397 = vmatpush1.xpose.msra.mxu0 0.0
        %1398 = vmatprep.subr.mxu0 0.0
        %1399 = vmatpush1.xpose.msra.mxu0 0.0
        %1400 = vmatprep.subr.mxu0 0.0
        %1401 = vmatpush1.xpose.msra.mxu0 0.0
        %1402 = vmatprep.subr.mxu0 0.0
        %1403 = vmatpush1.xpose.msra.mxu0 0.0
        %1404 = vmatprep.subr.mxu0 0.0
        %1405 = vmatpush1.xpose.msra.mxu0 0.0
        %1406 = vmatprep.subr.mxu0 0.0
        %1407 = vmatpush1.xpose.msra.mxu0 0.0
        %1408 = vmatprep.subr.mxu0 0.0
        %1409 = vmatpush1.xpose.msra.mxu0 0.0
        %1410 = vmatprep.subr.mxu0 0.0
        %1411 = vmatpush1.xpose.msra.mxu0 0.0
        %1412 = vmatprep.subr.mxu0 0.0
        %1413 = vmatpush1.xpose.msra.mxu0 0.0
        %1414 = vmatprep.subr.mxu0 0.0
        %1415 = vmatpush1.xpose.msra.mxu0 0.0
        %1416 = vmatprep.subr.mxu0 0.0
        %1417 = vmatpush1.xpose.msra.mxu0 0.0
        %1418 = vmatprep.subr.mxu0 0.0
        %1419 = vmatpush1.xpose.msra.mxu0 0.0
        %1420 = vmatprep.subr.mxu0 0.0
        %1421 = vmatpush1.xpose.msra.mxu0 0.0
        %1422 = vmatprep.subr.mxu0 0.0
        %1423 = vmatpush1.xpose.msra.mxu0 0.0
        %1424 = vmatprep.subr.mxu0 0.0
        %1425 = vmatpush1.xpose.msra.mxu0 0.0
        %1426 = vmatprep.subr.mxu0 0.0
        %1427 = vmatpush1.xpose.msra.mxu0 0.0
        %1428 = vmatprep.subr.mxu0 0.0
        %1429 = vmatpush1.xpose.msra.mxu0 0.0
        %1430 = vmatprep.subr.mxu0 0.0
        %1431 = vmatpush1.xpose.msra.mxu0 0.0
        %1432 = vmatprep.subr.mxu0 0.0
        %1433 = vmatpush1.xpose.msra.mxu0 0.0
        %1434 = vmatprep.subr.mxu0 0.0
        %1435 = vmatpush1.xpose.msra.mxu0 0.0
        %1436 = vmatprep.subr.mxu0 0.0
        %1437 = vmatpush1.xpose.msra.mxu0 0.0
        %1438 = vmatprep.subr.mxu0 0.0
        %1439 = vmatpush1.xpose.msra.mxu0 0.0
        %1440 = vmatprep.subr.mxu0 0.0
        %1441 = vmatpush1.xpose.msra.mxu0 0.0
        %1442 = vmatprep.subr.mxu0 0.0
        %1443 = vmatpush1.xpose.msra.mxu0 0.0
        %1444 = vmatprep.subr.mxu0 0.0
        %1445 = vmatpush1.xpose.msra.mxu0 0.0
        %1446 = vmatprep.subr.mxu0 0.0
        %1447 = vmatpush1.xpose.msra.mxu0 0.0
        %1448 = vmatprep.mubr.f32.mxu0 0.0
        %1449 = vmatmul.mubr.f32.gmra.mrb[0].mxu0 %v1380
        %v1450 = vpop.f32.mrb[0].mxu0
        %v1451 = vadd.f32 %v660, %v1450
        %v1452 = vpop.f32.mrb[0].mxu0
        %1453 = vdwg.mxu0
        %v1454 = vsel %vm661, %v1451, -inf
        %1455 = vmax.xlane.f32.xlu0 %v1454
        %v1456 = vpop.xlane.xlu0 %1455
        %v1457 = vsub.f32 %v1451, %v1456
        %v1458 = vmul.f32 %v1457, 1.442695
        %v1459 = vpow.pop %v1458
        %v1460 = vsel %vm661, %v1459, 0.0
        %1461 = vadd.xlane.f32.xlu0 %v1460
        %v1462 = vpop.xlane.xlu0 %1461
        %v1463 = vrcp.pop %v1462
        %v1464 = vmul.f32 %v1459, %v1463
        %1465 = vrot.lane.b32.xlu0 %v651, 104
        %v1466 = vpop.permute.xlu0 %1465
        %v1469 = vsel %vm661, %v1464, 0
        %1471 = vmatprep.subr.mxu0 0.0
        %1472 = vmatpush1.msra.mxu0 %v1466
        %1473 = vmatprep.subr.mxu0 0.0
        %1474 = vmatpush1.msra.mxu0 0.0
        %1475 = vmatprep.subr.mxu0 0.0
        %1476 = vmatpush1.msra.mxu0 0.0
        %1477 = vmatprep.subr.mxu0 0.0
        %1478 = vmatpush1.msra.mxu0 0.0
        %1479 = vmatprep.subr.mxu0 0.0
        %1480 = vmatpush1.msra.mxu0 0.0
        %1481 = vmatprep.subr.mxu0 0.0
        %1482 = vmatpush1.msra.mxu0 0.0
        %1483 = vmatprep.subr.mxu0 0.0
        %1484 = vmatpush1.msra.mxu0 0.0
        %1485 = vmatprep.subr.mxu0 0.0
        %1486 = vmatpush1.msra.mxu0 0.0
        %1487 = vmatprep.subr.mxu0 0.0
        %1488 = vmatpush1.msra.mxu0 0.0
        %1489 = vmatprep.subr.mxu0 0.0
        %1490 = vmatpush1.msra.mxu0 0.0
        %1491 = vmatprep.subr.mxu0 0.0
        %1492 = vmatpush1.msra.mxu0 0.0
        %1493 = vmatprep.subr.mxu0 0.0
        %1494 = vmatpush1.msra.mxu0 0.0
        %1495 = vmatprep.subr.mxu0 0.0
        %1496 = vmatpush1.msra.mxu0 0.0
        %1497 = vmatprep.subr.mxu0 0.0
        %1498 = vmatpush1.msra.mxu0 0.0
        %1499 = vmatprep.subr.mxu0 0.0
        %1500 = vmatpush1.msra.mxu0 0.0
        %1501 = vmatprep.subr.mxu0 0.0
        %1502 = vmatpush1.msra.mxu0 0.0
        %1503 = vmatprep.subr.mxu0 0.0
        %1504 = vmatpush1.msra.mxu0 0.0
        %1505 = vmatprep.subr.mxu0 0.0
        %1506 = vmatpush1.msra.mxu0 0.0
        %1507 = vmatprep.subr.mxu0 0.0
        %1508 = vmatpush1.msra.mxu0 0.0
        %1509 = vmatprep.subr.mxu0 0.0
        %1510 = vmatpush1.msra.mxu0 0.0
        %1511 = vmatprep.subr.mxu0 0.0
        %1512 = vmatpush1.msra.mxu0 0.0
        %1513 = vmatprep.subr.mxu0 0.0
        %1514 = vmatpush1.msra.mxu0 0.0
        %1515 = vmatprep.subr.mxu0 0.0
        %1516 = vmatpush1.msra.mxu0 0.0
        %1517 = vmatprep.subr.mxu0 0.0
        %1518 = vmatpush1.msra.mxu0 0.0
        %1519 = vmatprep.subr.mxu0 0.0
        %1520 = vmatpush1.msra.mxu0 0.0
        %1521 = vmatprep.subr.mxu0 0.0
        %1522 = vmatpush1.msra.mxu0 0.0
        %1523 = vmatprep.subr.mxu0 0.0
        %1524 = vmatpush1.msra.mxu0 0.0
        %1525 = vmatprep.subr.mxu0 0.0
        %1526 = vmatpush1.msra.mxu0 0.0
        %1527 = vmatprep.subr.mxu0 0.0
        %1528 = vmatpush1.msra.mxu0 0.0
        %1529 = vmatprep.subr.mxu0 0.0
        %1530 = vmatpush1.msra.mxu0 0.0
        %1531 = vmatprep.subr.mxu0 0.0
        %1532 = vmatpush1.msra.mxu0 0.0
        %1533 = vmatprep.subr.mxu0 0.0
        %1534 = vmatpush1.msra.mxu0 0.0
        %1535 = vmatprep.mubr.f32.mxu0 0.0
        %1536 = vmatmul.mubr.f32.gmra.mrb[0].mxu0 %v1469
        %v1537 = vpop.f32.mrb[0].mxu0
        %v1538 = vadd.f32 0.0, %v1537
        %v1539 = vpop.f32.mrb[0].mxu0
        %1540 = vdwg.mxu0
        %v1541 = vld [vmem:[#allocation10 + $0x18] sm:$0xff]
        %v1543 = vsel %vm661, %v1538, 0
        %1545 = vmatprep.subr.mxu0 0.0
        %1546 = vmatpush1.msra.mxu0 %v1541
        %1547 = vmatprep.subr.mxu0 0.0
        %1548 = vmatpush1.msra.mxu0 0.0
        %1549 = vmatprep.subr.mxu0 0.0
        %1550 = vmatpush1.msra.mxu0 0.0
        %1551 = vmatprep.subr.mxu0 0.0
        %1552 = vmatpush1.msra.mxu0 0.0
        %1553 = vmatprep.subr.mxu0 0.0
        %1554 = vmatpush1.msra.mxu0 0.0
        %1555 = vmatprep.subr.mxu0 0.0
        %1556 = vmatpush1.msra.mxu0 0.0
        %1557 = vmatprep.subr.mxu0 0.0
        %1558 = vmatpush1.msra.mxu0 0.0
        %1559 = vmatprep.subr.mxu0 0.0
        %1560 = vmatpush1.msra.mxu0 0.0
        %1561 = vmatprep.subr.mxu0 0.0
        %1562 = vmatpush1.msra.mxu0 0.0
        %1563 = vmatprep.subr.mxu0 0.0
        %1564 = vmatpush1.msra.mxu0 0.0
        %1565 = vmatprep.subr.mxu0 0.0
        %1566 = vmatpush1.msra.mxu0 0.0
        %1567 = vmatprep.subr.mxu0 0.0
        %1568 = vmatpush1.msra.mxu0 0.0
        %1569 = vmatprep.subr.mxu0 0.0
        %1570 = vmatpush1.msra.mxu0 0.0
        %1571 = vmatprep.subr.mxu0 0.0
        %1572 = vmatpush1.msra.mxu0 0.0
        %1573 = vmatprep.subr.mxu0 0.0
        %1574 = vmatpush1.msra.mxu0 0.0
        %1575 = vmatprep.subr.mxu0 0.0
        %1576 = vmatpush1.msra.mxu0 0.0
        %1577 = vmatprep.subr.mxu0 0.0
        %1578 = vmatpush1.msra.mxu0 0.0
        %1579 = vmatprep.subr.mxu0 0.0
        %1580 = vmatpush1.msra.mxu0 0.0
        %1581 = vmatprep.subr.mxu0 0.0
        %1582 = vmatpush1.msra.mxu0 0.0
        %1583 = vmatprep.subr.mxu0 0.0
        %1584 = vmatpush1.msra.mxu0 0.0
        %1585 = vmatprep.subr.mxu0 0.0
        %1586 = vmatpush1.msra.mxu0 0.0
        %1587 = vmatprep.subr.mxu0 0.0
        %1588 = vmatpush1.msra.mxu0 0.0
        %1589 = vmatprep.subr.mxu0 0.0
        %1590 = vmatpush1.msra.mxu0 0.0
        %1591 = vmatprep.subr.mxu0 0.0
        %1592 = vmatpush1.msra.mxu0 0.0
        %1593 = vmatprep.subr.mxu0 0.0
        %1594 = vmatpush1.msra.mxu0 0.0
        %1595 = vmatprep.subr.mxu0 0.0
        %1596 = vmatpush1.msra.mxu0 0.0
        %1597 = vmatprep.subr.mxu0 0.0
        %1598 = vmatpush1.msra.mxu0 0.0
        %1599 = vmatprep.subr.mxu0 0.0
        %1600 = vmatpush1.msra.mxu0 0.0
        %1601 = vmatprep.subr.mxu0 0.0
        %1602 = vmatpush1.msra.mxu0 0.0
        %1603 = vmatprep.subr.mxu0 0.0
        %1604 = vmatpush1.msra.mxu0 0.0
        %1605 = vmatprep.subr.mxu0 0.0
        %1606 = vmatpush1.msra.mxu0 0.0
        %1607 = vmatprep.subr.mxu0 0.0
        %1608 = vmatpush1.msra.mxu0 0.0
        %1609 = vmatprep.mubr.f32.mxu0 0.0
        %1610 = vmatmul.mubr.f32.gmra.mrb[0].mxu0 %v1543
        %v1611 = vpop.f32.mrb[0].mxu0
        %v1612 = vadd.f32 0.0, %v1611
        %v1613 = vpop.f32.mrb[0].mxu0
        %1614 = vdwg.mxu0
        %v1615 = vadd.f32 %v1375, %v1612
        %v1616 = vld [vmem:[%s8] sm:$0x1]
        %v1618 = vlaneseq
        %v1619 = vshrl.u32 %v1618, 7
        %v1620 = vsub.s32 0, %v1619
        %v1621 = vrot.slane %v1616, %v1620
        %v1623 = vadd.f32 %v1615, %v1621
        %1624 = vst.msk [vmem:[%s405] sm:$0xff] %vm418, %v1623
        %s1625 = sand.u32 %s230, 1
        %s1626 = scalar_lea.sflag [#allocation4], %s1625
        %s1627 = sand.u32 %s230, 1
        %s1628 = smul.addr %s1627, 8
        %s1629 = scalar_lea.vmem [#allocation11], %s1628
        // Predicated region
        $region77: #{tpu_custom_call.1} parent=55 // pred_check
          %p1630 = pneg %p240
        $region78: #{tpu_custom_call.1} parent=55 // pred_check_branch
          %1632 = sbr.rel (%p1630) target = $region80
        $region79: #{tpu_custom_call.1} parent=55 // pred_region
          %s1634 = ssub.s32 128, 128
          %1635 = vsyncadd %s1626, %s1634
          %s1636 = smul.addr %s28, 128
          %s1637 = scalar_lea.hbm %s9, %s1636
          %s1639 = sshll.u32 %s1629, 4
          %s1640 = int_to_ptr.vmem [resolvable:$true] %s1639
          %1642 = dma.vmem_to_hbm [thread:$0]  %s1640, 128, %s1637, %s1626
        $region80: #{tpu_custom_call.1} parent=55 // pred_fallthru
          _
      $region56: #{tpu_custom_call.1} parent=5 // pred_fallthru
        _
      %p1643 = scmp.le.s32.totalorder 2, %s23
      // Predicated region
      $region81: #{tpu_custom_call.1} parent=5 // pred_check
        %p1644 = pneg %p1643
      $region82: #{tpu_custom_call.1} parent=5 // pred_check_branch
        %1646 = sbr.rel (%p1644) target = $region84
      $region83: #{tpu_custom_call.1} parent=5 // pred_region
        %s1647 = ssub.s32 %s23, 2
        // Predicated region
        $region85: #{tpu_custom_call.1} parent=83 // pred_check
          %p1648 = pneg %p246
        $region86: #{tpu_custom_call.1} parent=83 // pred_check_branch
          %1650 = sbr.rel (%p1648) target = $region88
        $region87: #{tpu_custom_call.1} parent=83 // pred_region
          %s1651 = sand.u32 %s231, 1
          %s1652 = scalar_lea.sflag [#allocation4], %s1651
          %s1653 = sand.u32 %s231, 1
          %s1654 = smul.addr %s1653, 8
          %s1655 = scalar_lea.vmem [#allocation11], %s1654
          %1656 = dma.done %s1652, 128
        $region88: #{tpu_custom_call.1} parent=83 // pred_fallthru
          _
      $region84: #{tpu_custom_call.1} parent=5 // pred_fallthru
        _
    $region6: #{tpu_custom_call.1} parent=1 // loop_footer
      %s27 = sadd.s32 1, %s23
    $region7: #{tpu_custom_call.1} parent=1 // loop_footer_branch
      %22 = sbr.rel target = $region3
    $region8: #{tpu_custom_call.1} parent=1 // loop_exit
      _
    %1657 = vsyncpa [#allocation3], 1
    %s1658 = scalar_lea.sflag [#allocation3], 1
    %1659 = vsyncpa %s1658, 1
    %1660 = vsyncpa [#allocation6], 1
    %1661 = vsyncpa [#allocation9], 1
    %1662 = vsyncpa [#allocation4], 1
    %s1663 = scalar_lea.sflag [#allocation4], 1
    %1664 = vsyncpa %s1663, 1

</llo_original>
